<compile_context>
chip_gen: v7x
topology: tpu7x:2x2x1
jax: 0.10.0
libtpu: 0.0.40
codegen_flags: <defaults>
</compile_context>

<pallas_src>
import functools
import math

import jax
import jax.numpy as jnp
from jax.experimental import pallas as pl
from jax.experimental.pallas import tpu as pltpu


def mha_kernel(q_ref, k_ref, v_ref,
               wq_ref, wk_ref, wv_ref, wo_ref,
               cos_ref, sin_ref,
               o_ref,
               *, n_heads, d_k, d_v):
    """One grid step == (batch element b, query tile qi); all heads handled inside.

    q_ref             : (1, Sq, d_model) bf16   query tile
    k_ref / v_ref     : (1, S,  d_model) bf16   full-sequence key / value for batch b
    wq_ref / wk_ref   : (d_model, H*d_k) bf16   W_Q^T (1/sqrt(d_k) folded in) / W_K^T, resident
    wv_ref            : (d_model, H*d_v) bf16   W_V^T, resident
    wo_ref            : (H*d_v, d_model) bf16   W_O^T, resident
    cos_ref / sin_ref : (S, d_k)         bf16   RoPE tables (sin pre-signed for roll rotate-half)
    o_ref             : (1, Sq, d_model) bf16   output tile (written exactly once)
    """
    qi = pl.program_id(1)
    sq = q_ref.shape[1]
    half = d_k // 2

    # ---- packed projections: one full-width MXU matmul per Q/K/V across ALL heads ----
    q_all = jnp.dot(q_ref[0], wq_ref[...], preferred_element_type=jnp.float32)   # (Sq, H*d_k)
    k_all = jnp.dot(k_ref[0], wk_ref[...], preferred_element_type=jnp.float32)   # (S,  H*d_k)
    v_all = jnp.dot(v_ref[0], wv_ref[...], preferred_element_type=jnp.float32)   # (S,  H*d_v)

    # ---- RoPE tables: full-S resident; query rows sliced for this query tile ----
    cos_k = cos_ref[...]
    sin_k = sin_ref[...]
    row0 = pl.multiple_of(qi * sq, sq)
    cos_q = cos_ref[pl.ds(row0, sq), :]
    sin_q = sin_ref[pl.ds(row0, sq), :]

    head_outs = []
    for h in range(n_heads):   # static unroll; per-head slices are 128-lane aligned views
        qh = q_all[:, h * d_k:(h + 1) * d_k]          # (Sq, d_k)
        kh = k_all[:, h * d_k:(h + 1) * d_k]          # (S,  d_k)
        vh = v_all[:, h * d_v:(h + 1) * d_v]          # (S,  d_v)

        # rotate-half RoPE == roll by d_k//2 (XLU) * pre-signed sin; sign folded on the host.
        qh = qh * cos_q + pltpu.roll(qh, shift=half, axis=1) * sin_q
        kh = kh * cos_k + pltpu.roll(kh, shift=half, axis=1) * sin_k

        # scores: contract the last dims (no transpose); 1/sqrt(d_k) already in W_Q.
        s = jax.lax.dot_general(qh.astype(jnp.bfloat16), kh.astype(jnp.bfloat16),
                                (((1,), (1,)), ((), ())),
                                preferred_element_type=jnp.float32)               # (Sq, S)

        # softmax with DEFERRED normalization: exp on EUP, unnormalized PV matmul, then a single
        # (Sq, d_v) multiply by the approx reciprocal instead of an (Sq, S) one.
        m = jnp.max(s, axis=-1, keepdims=True)
        p = jnp.exp(s - m)                                         # in [0, 1] -> bf16-safe
        denom = jnp.sum(p, axis=-1, keepdims=True)
        attn = jnp.dot(p.astype(jnp.bfloat16), vh.astype(jnp.bfloat16),
                       preferred_element_type=jnp.float32)                        # (Sq, d_v)
        attn = attn * pl.reciprocal(denom, approx=True)
        head_outs.append(attn.astype(jnp.bfloat16))

    # Single deep output projection over all heads (contraction depth = H*d_v).
    attn_packed = jnp.concatenate(head_outs, axis=-1)                             # (Sq, H*d_v)
    o_ref[0] = jnp.dot(attn_packed, wo_ref[...],
                       preferred_element_type=jnp.float32).astype(o_ref.dtype)


def _pick_q_tile(S):
    """Largest 'nice' query tile that divides S (bounds VMEM on long sequences)."""
    for cand in (512, 256, 128):
        if S >= cand and S % cand == 0:
            return cand
    return S


def multi_head_attention(key, query, value, wq, wk, wv, wo, cos, sin,
                         *, n_heads, d_k, d_v):
    """Forward of the PyTorch MultiHeadAttention (is_xattn=False, no masks, dropout=0)."""
    B, S, d_model = query.shape
    assert key.shape == (B, S, d_model) and value.shape == (B, S, d_model)
    assert d_k % 128 == 0 and d_v % 128 == 0, (
        "per-head lane slices must be 128-aligned; pack head pairs for d_k=64 models")

    sq = _pick_q_tile(S)
    n_q = S // sq
    Hdk, Hdv = n_heads * d_k, n_heads * d_v

    # ---- host-side preparation (zero math change) ----
    scale = 1.0 / math.sqrt(d_k)
    wq_t = (wq.T * scale).astype(jnp.bfloat16)          # (d_model, H*d_k), scale folded in
    wk_t = wk.T.astype(jnp.bfloat16)                    # (d_model, H*d_k)
    wv_t = wv.T.astype(jnp.bfloat16)                    # (d_model, H*d_v)
    wo_t = wo.T.astype(jnp.bfloat16)                    # (H*d_v, d_model)
    half = d_k // 2
    cos_bf = cos.astype(jnp.bfloat16)                                              # (S, d_k)
    sin_bf = jnp.concatenate([-sin[:, :half], sin[:, half:]], axis=-1).astype(jnp.bfloat16)

    q_bf = query.astype(jnp.bfloat16)
    k_bf = key.astype(jnp.bfloat16)
    v_bf = value.astype(jnp.bfloat16)

    # ---- generation-aware VMEM ceiling (v5e/v6e 128 MiB phys, v7x 64 MiB phys) ----
    try:
        vmem_cap = pltpu.get_tpu_info().vmem_capacity_bytes
    except Exception:
        vmem_cap = 64 * 1024 * 1024
    vmem_limit = max(32 * 1024 * 1024, min(int(vmem_cap * 0.85), 112 * 1024 * 1024))

    flops = int(2 * B * S * d_model * Hdk                    # Q projection
                + 2 * B * n_q * S * d_model * (Hdk + Hdv)    # K/V projections (per q tile)
                + 2 * B * n_heads * S * S * (d_k + d_v)      # QK^T and PV
                + 2 * B * S * Hdv * d_model)                 # output projection
    transcendentals = int(B * n_heads * S * S)               # softmax exp
    bytes_accessed = int(B * S * d_model * 2                 # Q (bf16)
                         + 2 * B * n_q * S * d_model * 2     # K, V re-fetched per q tile
                         + (2 * d_model * Hdk + 2 * d_model * Hdv) * 2   # weights, fetched once
                         + 2 * S * d_k * 2                   # RoPE tables (bf16)
                         + B * S * d_model * 2)              # bf16 output

    kernel = functools.partial(mha_kernel, n_heads=n_heads, d_k=d_k, d_v=d_v)

    return pl.pallas_call(
        kernel,
        out_shape=jax.ShapeDtypeStruct((B, S, d_model), jnp.bfloat16),
        grid_spec=pltpu.PrefetchScalarGridSpec(
            num_scalar_prefetch=0,
            grid=(B, n_q),                       # both axes fully parallel (no reduction axis)
            in_specs=[
                pl.BlockSpec((1, sq, d_model), lambda b, qi: (b, qi, 0)),   # query tile
                pl.BlockSpec((1, S, d_model), lambda b, qi: (b, 0, 0)),     # key (full S)
                pl.BlockSpec((1, S, d_model), lambda b, qi: (b, 0, 0)),     # value (full S)
                pl.BlockSpec((d_model, Hdk), lambda b, qi: (0, 0)),         # W_Q^T (scaled), resident
                pl.BlockSpec((d_model, Hdk), lambda b, qi: (0, 0)),         # W_K^T, resident
                pl.BlockSpec((d_model, Hdv), lambda b, qi: (0, 0)),         # W_V^T, resident
                pl.BlockSpec((Hdv, d_model), lambda b, qi: (0, 0)),         # W_O^T, resident
                pl.BlockSpec((S, d_k), lambda b, qi: (0, 0)),               # RoPE cos (bf16)
                pl.BlockSpec((S, d_k), lambda b, qi: (0, 0)),               # RoPE sin (pre-signed)
            ],
            out_specs=pl.BlockSpec((1, sq, d_model), lambda b, qi: (b, qi, 0)),
        ),
        compiler_params=pltpu.CompilerParams(
            dimension_semantics=("parallel", "parallel"),
            vmem_limit_bytes=vmem_limit,
        ),
        cost_estimate=pl.CostEstimate(flops=flops,
                                      transcendentals=transcendentals,
                                      bytes_accessed=bytes_accessed),
    )(q_bf, k_bf, v_bf, wq_t, wk_t, wv_t, wo_t, cos_bf, sin_bf)


def reference_mha(key, query, value, wq, wk, wv, wo, cos, sin, *, n_heads, d_k, d_v):
    """Pure-JAX reference with the same math as the PyTorch forward.

    Mirrors the kernel's bf16-input / fp32-accumulate matmuls and bf16 RoPE tables so the
    correctness check is tight and deterministic.
    """
    B, S, _ = key.shape

    def mm(a, b):
        return jnp.dot(a.astype(jnp.bfloat16), b.astype(jnp.bfloat16),
                       preferred_element_type=jnp.float32)

    q = mm(query, wq.T)                                   # (B, S, H*d_k)
    k = mm(key, wk.T)
    v = mm(value, wv.T)
    q = q.reshape(B, S, n_heads, d_k).transpose(0, 2, 1, 3)
    k = k.reshape(B, S, n_heads, d_k).transpose(0, 2, 1, 3)
    v = v.reshape(B, S, n_heads, d_v).transpose(0, 2, 1, 3)

    half = d_k // 2
    cos_r = cos.astype(jnp.bfloat16).astype(jnp.float32)   # mirror kernel's bf16 table storage
    sin_r = sin.astype(jnp.bfloat16).astype(jnp.float32)

    def rope(x):
        x1, x2 = x[..., :half], x[..., half:]
        return x * cos_r + jnp.concatenate([-x2, x1], axis=-1) * sin_r

    q, k = rope(q), rope(k)
    s = jnp.einsum("bhqd,bhkd->bhqk", q.astype(jnp.bfloat16), k.astype(jnp.bfloat16),
                   preferred_element_type=jnp.float32) / math.sqrt(d_k)
    p = jax.nn.softmax(s, axis=-1)
    o = jnp.einsum("bhqk,bhkd->bhqd", p.astype(jnp.bfloat16), v.astype(jnp.bfloat16),
                   preferred_element_type=jnp.float32)
    o = o.transpose(0, 2, 1, 3).reshape(B, S, n_heads * d_v)
    return mm(o, wo.T)


if __name__ == "__main__":
    # Small but lane-aligned shapes (lane dims multiples of 128).
    B, S, d_model = 2, 128, 128
    n_heads, d_k, d_v = 2, 128, 128

    root = jax.random.PRNGKey(0)
    kq, kk, kv, kwq, kwk, kwv, kwo = jax.random.split(root, 7)

    query = jax.random.normal(kq, (B, S, d_model), jnp.float32)
    key = jax.random.normal(kk, (B, S, d_model), jnp.float32)
    value = jax.random.normal(kv, (B, S, d_model), jnp.float32)

    init_scale = 1.0 / math.sqrt(d_model)
    wq = jax.random.normal(kwq, (n_heads * d_k, d_model), jnp.float32) * init_scale
    wk = jax.random.normal(kwk, (n_heads * d_k, d_model), jnp.float32) * init_scale
    wv = jax.random.normal(kwv, (n_heads * d_v, d_model), jnp.float32) * init_scale
    wo = jax.random.normal(kwo, (d_model, n_heads * d_v), jnp.float32) * (1.0 / math.sqrt(n_heads * d_v))

    # RoPE tables (rotate-half convention), per attention head of width d_k.
    pos = jnp.arange(S, dtype=jnp.float32)
    inv_freq = 1.0 / (10000.0 ** (jnp.arange(0, d_k, 2, dtype=jnp.float32) / d_k))
    freqs = pos[:, None] * inv_freq[None, :]                              # (S, d_k//2)
    cos = jnp.concatenate([jnp.cos(freqs), jnp.cos(freqs)], axis=-1)      # (S, d_k)
    sin = jnp.concatenate([jnp.sin(freqs), jnp.sin(freqs)], axis=-1)      # (S, d_k)

    out = multi_head_attention(key, query, value, wq, wk, wv, wo, cos, sin,
                               n_heads=n_heads, d_k=d_k, d_v=d_v)
    out = jax.block_until_ready(out)

    ref = reference_mha(key, query, value, wq, wk, wv, wo, cos, sin,
                        n_heads=n_heads, d_k=d_k, d_v=d_v)
    assert out.shape == (B, S, d_model)
    assert out.dtype == jnp.bfloat16
    out_f = out.astype(jnp.float32)
    max_err = float(jnp.max(jnp.abs(out_f - ref)))
    # bf16 matmul inputs + bf16 RoPE tables + approx reciprocal + bf16 output writeback.
    assert jnp.allclose(out_f, ref, atol=3e-2, rtol=3e-2), max_err

    print("KERNEL_OK")
</pallas_src>

<mosaic_0001>
module attributes {stable_mosaic.version = 11 : i64} {
  func.func @mha_kernel(%arg0: i32, %arg1: i32, %arg2: memref<1x128x128xbf16, #tpu.memory_space<vmem>>, %arg3: memref<1x128x128xbf16, #tpu.memory_space<vmem>>, %arg4: memref<1x128x128xbf16, #tpu.memory_space<vmem>>, %arg5: memref<128x256xbf16, #tpu.memory_space<vmem>>, %arg6: memref<128x256xbf16, #tpu.memory_space<vmem>>, %arg7: memref<128x256xbf16, #tpu.memory_space<vmem>>, %arg8: memref<256x128xbf16, #tpu.memory_space<vmem>>, %arg9: memref<128x128xbf16, #tpu.memory_space<vmem>>, %arg10: memref<128x128xbf16, #tpu.memory_space<vmem>>, %arg11: memref<1x128x128xbf16, #tpu.memory_space<vmem>>) attributes {dimension_semantics = [#tpu.dimension_semantics<parallel>, #tpu.dimension_semantics<parallel>], iteration_bounds = array<i64: 2, 1>, scalar_prefetch = 0 : i64, scratch_operands = 0 : i64, tpu.core_type = #tpu.core_type<tc>, window_params = [{transform_indices = @transform_0, window_bounds = array<i64: 1, 128, 128>}, {transform_indices = @transform_1, window_bounds = array<i64: 1, 128, 128>}, {transform_indices = @transform_2, window_bounds = array<i64: 1, 128, 128>}, {pipeline_mode = #tpu.pipeline_mode<synchronous>, transform_indices = @transform_3, window_bounds = array<i64: 128, 256>}, {pipeline_mode = #tpu.pipeline_mode<synchronous>, transform_indices = @transform_4, window_bounds = array<i64: 128, 256>}, {pipeline_mode = #tpu.pipeline_mode<synchronous>, transform_indices = @transform_5, window_bounds = array<i64: 128, 256>}, {pipeline_mode = #tpu.pipeline_mode<synchronous>, transform_indices = @transform_6, window_bounds = array<i64: 256, 128>}, {pipeline_mode = #tpu.pipeline_mode<synchronous>, transform_indices = @transform_7, window_bounds = array<i64: 128, 128>}, {pipeline_mode = #tpu.pipeline_mode<synchronous>, transform_indices = @transform_8, window_bounds = array<i64: 128, 128>}, {transform_indices = @transform_9, window_bounds = array<i64: 1, 128, 128>}]} {
    %c0 = arith.constant 0 : index
    %c0_0 = arith.constant 0 : index
    %c0_1 = arith.constant 0 : index
    %0 = vector.load %arg2[%c0, %c0_0, %c0_1] : memref<1x128x128xbf16, #tpu.memory_space<vmem>>, vector<1x128x128xbf16>
    %1 = vector.shape_cast %0 : vector<1x128x128xbf16> to vector<128x128xbf16>
    %c0_2 = arith.constant 0 : index
    %c0_3 = arith.constant 0 : index
    %2 = vector.load %arg5[%c0_2, %c0_3] : memref<128x256xbf16, #tpu.memory_space<vmem>>, vector<128x256xbf16>
    %cst = arith.constant dense<0.000000e+00> : vector<128x256xf32>
    %3 = tpu.matmul %1, %2, %cst {dimension_numbers = #tpu.dot_dimension_numbers<[1], [0], [0], [1], [0, 0, 1, 1], [], []>} : vector<128x128xbf16>, vector<128x256xbf16>, vector<128x256xf32> -> vector<128x256xf32>
    %c0_4 = arith.constant 0 : index
    %c0_5 = arith.constant 0 : index
    %c0_6 = arith.constant 0 : index
    %4 = vector.load %arg3[%c0_4, %c0_5, %c0_6] : memref<1x128x128xbf16, #tpu.memory_space<vmem>>, vector<1x128x128xbf16>
    %5 = vector.shape_cast %4 : vector<1x128x128xbf16> to vector<128x128xbf16>
    %c0_7 = arith.constant 0 : index
    %c0_8 = arith.constant 0 : index
    %6 = vector.load %arg6[%c0_7, %c0_8] : memref<128x256xbf16, #tpu.memory_space<vmem>>, vector<128x256xbf16>
    %cst_9 = arith.constant dense<0.000000e+00> : vector<128x256xf32>
    %7 = tpu.matmul %5, %6, %cst_9 {dimension_numbers = #tpu.dot_dimension_numbers<[1], [0], [0], [1], [0, 0, 1, 1], [], []>} : vector<128x128xbf16>, vector<128x256xbf16>, vector<128x256xf32> -> vector<128x256xf32>
    %c0_10 = arith.constant 0 : index
    %c0_11 = arith.constant 0 : index
    %c0_12 = arith.constant 0 : index
    %8 = vector.load %arg4[%c0_10, %c0_11, %c0_12] : memref<1x128x128xbf16, #tpu.memory_space<vmem>>, vector<1x128x128xbf16>
    %9 = vector.shape_cast %8 : vector<1x128x128xbf16> to vector<128x128xbf16>
    %c0_13 = arith.constant 0 : index
    %c0_14 = arith.constant 0 : index
    %10 = vector.load %arg7[%c0_13, %c0_14] : memref<128x256xbf16, #tpu.memory_space<vmem>>, vector<128x256xbf16>
    %cst_15 = arith.constant dense<0.000000e+00> : vector<128x256xf32>
    %11 = tpu.matmul %9, %10, %cst_15 {dimension_numbers = #tpu.dot_dimension_numbers<[1], [0], [0], [1], [0, 0, 1, 1], [], []>} : vector<128x128xbf16>, vector<128x256xbf16>, vector<128x256xf32> -> vector<128x256xf32>
    %c0_16 = arith.constant 0 : index
    %c0_17 = arith.constant 0 : index
    %12 = vector.load %arg9[%c0_16, %c0_17] : memref<128x128xbf16, #tpu.memory_space<vmem>>, vector<128x128xbf16>
    %c0_18 = arith.constant 0 : index
    %c0_19 = arith.constant 0 : index
    %13 = vector.load %arg10[%c0_18, %c0_19] : memref<128x128xbf16, #tpu.memory_space<vmem>>, vector<128x128xbf16>
    %c128_i32 = arith.constant 128 : i32
    %14 = arith.muli %arg1, %c128_i32 : i32
    %15 = tpu.assume_multiple %14, 128 : i32
    %16 = arith.index_cast %15 : i32 to index
    %c0_20 = arith.constant 0 : index
    %17 = vector.load %arg9[%16, %c0_20] : memref<128x128xbf16, #tpu.memory_space<vmem>>, vector<128x128xbf16>
    %18 = arith.index_cast %15 : i32 to index
    %c0_21 = arith.constant 0 : index
    %19 = vector.load %arg10[%18, %c0_21] : memref<128x128xbf16, #tpu.memory_space<vmem>>, vector<128x128xbf16>
    %20 = vector.extract_strided_slice %3 {offsets = [0, 0], sizes = [128, 128], strides = [1, 1]} : vector<128x256xf32> to vector<128x128xf32>
    %21 = vector.extract_strided_slice %7 {offsets = [0, 0], sizes = [128, 128], strides = [1, 1]} : vector<128x256xf32> to vector<128x128xf32>
    %22 = vector.extract_strided_slice %11 {offsets = [0, 0], sizes = [128, 128], strides = [1, 1]} : vector<128x256xf32> to vector<128x128xf32>
    %23 = arith.extf %17 : vector<128x128xbf16> to vector<128x128xf32>
    %24 = arith.mulf %20, %23 : vector<128x128xf32>
    %c64_i32 = arith.constant 64 : i32
    %25 = tpu.dynamic_rotate %20 by %c64_i32 dim 1 : vector<128x128xf32>, i32 -> vector<128x128xf32>
    %26 = arith.extf %19 : vector<128x128xbf16> to vector<128x128xf32>
    %27 = arith.mulf %25, %26 : vector<128x128xf32>
    %28 = arith.addf %24, %27 : vector<128x128xf32>
    %29 = arith.extf %12 : vector<128x128xbf16> to vector<128x128xf32>
    %30 = arith.mulf %21, %29 : vector<128x128xf32>
    %c64_i32_22 = arith.constant 64 : i32
    %31 = tpu.dynamic_rotate %21 by %c64_i32_22 dim 1 : vector<128x128xf32>, i32 -> vector<128x128xf32>
    %32 = arith.extf %13 : vector<128x128xbf16> to vector<128x128xf32>
    %33 = arith.mulf %31, %32 : vector<128x128xf32>
    %34 = arith.addf %30, %33 : vector<128x128xf32>
    %35 = arith.truncf %28 : vector<128x128xf32> to vector<128x128xbf16>
    %36 = arith.truncf %34 : vector<128x128xf32> to vector<128x128xbf16>
    %cst_23 = arith.constant dense<0.000000e+00> : vector<128x128xf32>
    %37 = tpu.matmul %35, %36, %cst_23 {dimension_numbers = #tpu.dot_dimension_numbers<[1], [1], [0], [0], [0, 0, 1, 0], [], []>} : vector<128x128xbf16>, vector<128x128xbf16>, vector<128x128xf32> -> vector<128x128xf32>
    %cst_24 = arith.constant dense<0xFF800000> : vector<128xf32>
    %38 = vector.multi_reduction <maximumf>, %37, %cst_24 [1] : vector<128x128xf32> to vector<128xf32>
    %39 = vector.shape_cast %38 : vector<128xf32> to vector<128x1xf32>
    %40 = vector.broadcast %39 : vector<128x1xf32> to vector<128x128xf32>
    %41 = arith.subf %37, %40 : vector<128x128xf32>
    %42 = math.exp %41 : vector<128x128xf32>
    %cst_25 = arith.constant dense<0.000000e+00> : vector<128xf32>
    %43 = vector.multi_reduction <add>, %42, %cst_25 [1] : vector<128x128xf32> to vector<128xf32>
    %44 = vector.shape_cast %43 : vector<128xf32> to vector<128x1xf32>
    %45 = arith.truncf %42 : vector<128x128xf32> to vector<128x128xbf16>
    %46 = arith.truncf %22 : vector<128x128xf32> to vector<128x128xbf16>
    %cst_26 = arith.constant dense<0.000000e+00> : vector<128x128xf32>
    %47 = tpu.matmul %45, %46, %cst_26 {dimension_numbers = #tpu.dot_dimension_numbers<[1], [0], [0], [1], [0, 0, 1, 1], [], []>} : vector<128x128xbf16>, vector<128x128xbf16>, vector<128x128xf32> -> vector<128x128xf32>
    %48 = tpu.reciprocal %44 {approx = true} : vector<128x1xf32> -> vector<128x1xf32>
    %49 = vector.broadcast %48 : vector<128x1xf32> to vector<128x128xf32>
    %50 = arith.mulf %47, %49 : vector<128x128xf32>
    %51 = arith.truncf %50 : vector<128x128xf32> to vector<128x128xbf16>
    %52 = vector.extract_strided_slice %3 {offsets = [0, 128], sizes = [128, 128], strides = [1, 1]} : vector<128x256xf32> to vector<128x128xf32>
    %53 = vector.extract_strided_slice %7 {offsets = [0, 128], sizes = [128, 128], strides = [1, 1]} : vector<128x256xf32> to vector<128x128xf32>
    %54 = vector.extract_strided_slice %11 {offsets = [0, 128], sizes = [128, 128], strides = [1, 1]} : vector<128x256xf32> to vector<128x128xf32>
    %55 = arith.extf %17 : vector<128x128xbf16> to vector<128x128xf32>
    %56 = arith.mulf %52, %55 : vector<128x128xf32>
    %c64_i32_27 = arith.constant 64 : i32
    %57 = tpu.dynamic_rotate %52 by %c64_i32_27 dim 1 : vector<128x128xf32>, i32 -> vector<128x128xf32>
    %58 = arith.extf %19 : vector<128x128xbf16> to vector<128x128xf32>
    %59 = arith.mulf %57, %58 : vector<128x128xf32>
    %60 = arith.addf %56, %59 : vector<128x128xf32>
    %61 = arith.extf %12 : vector<128x128xbf16> to vector<128x128xf32>
    %62 = arith.mulf %53, %61 : vector<128x128xf32>
    %c64_i32_28 = arith.constant 64 : i32
    %63 = tpu.dynamic_rotate %53 by %c64_i32_28 dim 1 : vector<128x128xf32>, i32 -> vector<128x128xf32>
    %64 = arith.extf %13 : vector<128x128xbf16> to vector<128x128xf32>
    %65 = arith.mulf %63, %64 : vector<128x128xf32>
    %66 = arith.addf %62, %65 : vector<128x128xf32>
    %67 = arith.truncf %60 : vector<128x128xf32> to vector<128x128xbf16>
    %68 = arith.truncf %66 : vector<128x128xf32> to vector<128x128xbf16>
    %cst_29 = arith.constant dense<0.000000e+00> : vector<128x128xf32>
    %69 = tpu.matmul %67, %68, %cst_29 {dimension_numbers = #tpu.dot_dimension_numbers<[1], [1], [0], [0], [0, 0, 1, 0], [], []>} : vector<128x128xbf16>, vector<128x128xbf16>, vector<128x128xf32> -> vector<128x128xf32>
    %cst_30 = arith.constant dense<0xFF800000> : vector<128xf32>
    %70 = vector.multi_reduction <maximumf>, %69, %cst_30 [1] : vector<128x128xf32> to vector<128xf32>
    %71 = vector.shape_cast %70 : vector<128xf32> to vector<128x1xf32>
    %72 = vector.broadcast %71 : vector<128x1xf32> to vector<128x128xf32>
    %73 = arith.subf %69, %72 : vector<128x128xf32>
    %74 = math.exp %73 : vector<128x128xf32>
    %cst_31 = arith.constant dense<0.000000e+00> : vector<128xf32>
    %75 = vector.multi_reduction <add>, %74, %cst_31 [1] : vector<128x128xf32> to vector<128xf32>
    %76 = vector.shape_cast %75 : vector<128xf32> to vector<128x1xf32>
    %77 = arith.truncf %74 : vector<128x128xf32> to vector<128x128xbf16>
    %78 = arith.truncf %54 : vector<128x128xf32> to vector<128x128xbf16>
    %cst_32 = arith.constant dense<0.000000e+00> : vector<128x128xf32>
    %79 = tpu.matmul %77, %78, %cst_32 {dimension_numbers = #tpu.dot_dimension_numbers<[1], [0], [0], [1], [0, 0, 1, 1], [], []>} : vector<128x128xbf16>, vector<128x128xbf16>, vector<128x128xf32> -> vector<128x128xf32>
    %80 = tpu.reciprocal %76 {approx = true} : vector<128x1xf32> -> vector<128x1xf32>
    %81 = vector.broadcast %80 : vector<128x1xf32> to vector<128x128xf32>
    %82 = arith.mulf %79, %81 : vector<128x128xf32>
    %83 = arith.truncf %82 : vector<128x128xf32> to vector<128x128xbf16>
    %84 = tpu.concatenate %51, %83 in 1 : vector<128x128xbf16>, vector<128x128xbf16> -> vector<128x256xbf16>
    %c0_33 = arith.constant 0 : index
    %c0_34 = arith.constant 0 : index
    %85 = vector.load %arg8[%c0_33, %c0_34] : memref<256x128xbf16, #tpu.memory_space<vmem>>, vector<256x128xbf16>
    %cst_35 = arith.constant dense<0.000000e+00> : vector<128x128xf32>
    %86 = tpu.matmul %84, %85, %cst_35 {dimension_numbers = #tpu.dot_dimension_numbers<[1], [0], [0], [1], [0, 0, 1, 1], [], []>} : vector<128x256xbf16>, vector<256x128xbf16>, vector<128x128xf32> -> vector<128x128xf32>
    %87 = arith.truncf %86 : vector<128x128xf32> to vector<128x128xbf16>
    %c0_36 = arith.constant 0 : index
    %c0_37 = arith.constant 0 : index
    %c0_38 = arith.constant 0 : index
    %88 = vector.load %arg11[%c0_36, %c0_37, %c0_38] : memref<1x128x128xbf16, #tpu.memory_space<vmem>>, vector<1x128x128xbf16>
    %89 = vector.shape_cast %88 : vector<1x128x128xbf16> to vector<128x128xbf16>
    %90 = vector.shape_cast %87 : vector<128x128xbf16> to vector<1x128x128xbf16>
    tpu.vector_store %arg11[%c0_36, %c0_37, %c0_38], %90 {strides = array<i32>} : memref<1x128x128xbf16, #tpu.memory_space<vmem>>, vector<1x128x128xbf16>,
    return
  }
  func.func @transform_0(%arg0: i32, %arg1: i32) -> (i32, i32, i32) {
    %c0_i32 = arith.constant 0 : i32
    %c0_i32_0 = arith.constant 0 : i32
    return %arg0, %arg1, %c0_i32 : i32, i32, i32
  }
  func.func @transform_1(%arg0: i32, %arg1: i32) -> (i32, i32, i32) {
    %c0_i32 = arith.constant 0 : i32
    %c0_i32_0 = arith.constant 0 : i32
    %c0_i32_1 = arith.constant 0 : i32
    return %arg0, %c0_i32, %c0_i32_0 : i32, i32, i32
  }
  func.func @transform_2(%arg0: i32, %arg1: i32) -> (i32, i32, i32) {
    %c0_i32 = arith.constant 0 : i32
    %c0_i32_0 = arith.constant 0 : i32
    %c0_i32_1 = arith.constant 0 : i32
    return %arg0, %c0_i32, %c0_i32_0 : i32, i32, i32
  }
  func.func @transform_3(%arg0: i32, %arg1: i32) -> (i32, i32) {
    %c0_i32 = arith.constant 0 : i32
    %c0_i32_0 = arith.constant 0 : i32
    %c0_i32_1 = arith.constant 0 : i32
    return %c0_i32, %c0_i32_0 : i32, i32
  }
  func.func @transform_4(%arg0: i32, %arg1: i32) -> (i32, i32) {
    %c0_i32 = arith.constant 0 : i32
    %c0_i32_0 = arith.constant 0 : i32
    %c0_i32_1 = arith.constant 0 : i32
    return %c0_i32, %c0_i32_0 : i32, i32
  }
  func.func @transform_5(%arg0: i32, %arg1: i32) -> (i32, i32) {
    %c0_i32 = arith.constant 0 : i32
    %c0_i32_0 = arith.constant 0 : i32
    %c0_i32_1 = arith.constant 0 : i32
    return %c0_i32, %c0_i32_0 : i32, i32
  }
  func.func @transform_6(%arg0: i32, %arg1: i32) -> (i32, i32) {
    %c0_i32 = arith.constant 0 : i32
    %c0_i32_0 = arith.constant 0 : i32
    %c0_i32_1 = arith.constant 0 : i32
    return %c0_i32, %c0_i32_0 : i32, i32
  }
  func.func @transform_7(%arg0: i32, %arg1: i32) -> (i32, i32) {
    %c0_i32 = arith.constant 0 : i32
    %c0_i32_0 = arith.constant 0 : i32
    %c0_i32_1 = arith.constant 0 : i32
    return %c0_i32, %c0_i32_0 : i32, i32
  }
  func.func @transform_8(%arg0: i32, %arg1: i32) -> (i32, i32) {
    %c0_i32 = arith.constant 0 : i32
    %c0_i32_0 = arith.constant 0 : i32
    %c0_i32_1 = arith.constant 0 : i32
    return %c0_i32, %c0_i32_0 : i32, i32
  }
  func.func @transform_9(%arg0: i32, %arg1: i32) -> (i32, i32, i32) {
    %c0_i32 = arith.constant 0 : i32
    %c0_i32_0 = arith.constant 0 : i32
    return %arg0, %arg1, %c0_i32 : i32, i32, i32
  }
}

</mosaic_0001>

<llo_original>
// kernel: tpu_custom_call.1
$region0: #{tpu_custom_call.1}
  #allocation0 [shape = 'u32[]', space=smem, size = 0x4, offset = 0x4, fixed_abs, tag = 'smem constant byte address 0x4 - core index']
  #allocation1 [shape = 'u32[144,128]{1,0:T(1,128)}', space=vmem, size = 0x12000, scoped, tag = 'internal scratch']
  %s0 = inlined_call_operand.hbm [shape: bf16[2,128,128], index: 0, kind: input, shape index: {}]
  %s1 = inlined_call_operand.hbm [shape: bf16[2,128,128], index: 1, kind: input, shape index: {}]
  %s2 = inlined_call_operand.hbm [shape: bf16[2,128,128], index: 2, kind: input, shape index: {}]
  %s3 = inlined_call_operand.hbm [shape: bf16[128,256], index: 3, kind: input, shape index: {}]
  %s4 = inlined_call_operand.hbm [shape: bf16[128,256], index: 4, kind: input, shape index: {}]
  %s5 = inlined_call_operand.hbm [shape: bf16[128,256], index: 5, kind: input, shape index: {}]
  %s6 = inlined_call_operand.hbm [shape: bf16[256,128], index: 6, kind: input, shape index: {}]
  %s7 = inlined_call_operand.hbm [shape: bf16[128,128], index: 7, kind: input, shape index: {}]
  %s8 = inlined_call_operand.hbm [shape: bf16[128,128], index: 8, kind: input, shape index: {}]
  %s9 = inlined_call_operand.hbm [shape: bf16[2,128,128], index: 9, kind: output, shape index: {}]
  %s10 = sld [smem:[#allocation0]]
  $region105: #{tpu_custom_call.1} parent=0
    _
  %s12 = ssub.s32 1, %s10
  %s13 = scalar_select 0, %s12, %s10
  $region1: #{tpu_custom_call.1} parent=0
    #allocation2 [shape = 'u8[65536]{0}', space=vmem, size = 0x10000, scoped, tag = 'input window, operand 0']
    #allocation3 [shape = 's32[2]{0}', space=sflag, size = 0x8, scoped, tag = 'scoped memory for tpu_custom_call.1']
    #allocation4 [shape = 's32[2]{0}', space=sflag, size = 0x8, scoped, tag = 'scoped memory for tpu_custom_call.1']
    #allocation5 [shape = 'u8[65536]{0}', space=vmem, size = 0x10000, scoped, tag = 'input window, operand 1']
    #allocation6 [shape = 's32[2]{0}', space=sflag, size = 0x8, scoped, tag = 'scoped memory for tpu_custom_call.1']
    #allocation7 [shape = 'u8[65536]{0}', space=vmem, size = 0x10000, scoped, tag = 'input window, operand 2']
    #allocation8 [shape = 'u8[65536]{0}', space=vmem, size = 0x10000, scoped, tag = 'input window, operand 3, single buffered']
    #allocation9 [shape = 's32[1]{0}', space=sflag, size = 0x4, scoped, tag = 'scoped memory for tpu_custom_call.1']
    #allocation10 [shape = 'u8[65536]{0}', space=vmem, size = 0x10000, scoped, tag = 'input window, operand 4, single buffered']
    #allocation11 [shape = 'u8[65536]{0}', space=vmem, size = 0x10000, scoped, tag = 'input window, operand 5, single buffered']
    #allocation12 [shape = 's32[1]{0}', space=sflag, size = 0x4, scoped, tag = 'scoped memory for tpu_custom_call.1']
    #allocation13 [shape = 'u8[65536]{0}', space=vmem, size = 0x10000, scoped, tag = 'input window, operand 6, single buffered']
    #allocation14 [shape = 'u8[32768]{0}', space=vmem, size = 0x8000, scoped, tag = 'input window, operand 7, single buffered']
    #allocation15 [shape = 's32[1]{0}', space=sflag, size = 0x4, scoped, tag = 'scoped memory for tpu_custom_call.1']
    #allocation16 [shape = 'u8[32768]{0}', space=vmem, size = 0x8000, scoped, tag = 'input window, operand 8, single buffered']
    #allocation17 [shape = 'u8[65536]{0}', space=vmem, size = 0x10000, scoped, tag = 'output window, operand 0']
    %14 = vsyncpa [#allocation3], 0
    %s15 = scalar_lea.sflag [#allocation3], 1
    %16 = vsyncpa %s15, 0
    %17 = vsyncpa [#allocation6], 0
    %s18 = scalar_lea.sflag [#allocation6], 1
    %19 = vsyncpa %s18, 0
    %20 = vsyncpa [#allocation9], 0
    %21 = vsyncpa [#allocation12], 0
    %22 = vsyncpa [#allocation15], 0
    %23 = vsyncpa [#allocation4], 0
    %s24 = scalar_lea.sflag [#allocation4], 1
    %25 = vsyncpa %s24, 0
    loop: start=0, step=1, limit=4
    $region2: #{tpu_custom_call.1} parent=1 // loop_pre_header
      _
    $region3: #{tpu_custom_call.1} parent=1 // loop_header
      %s27 = sphi 0, %s31
      %p28 = scmp.ge.s32.totalorder %s27, 4
      %s34 = sphi 0, %s46
      %s35 = sphi 0, %s42
      %s36 = sphi 0, %s34
      %s37 = sphi 0, %s35
      %s38 = sphi 0, %s36
      %s39 = sphi 0, %s37
      %s51 = sphi 0, %s53
      %s54 = sphi 0, %s51
      %s55 = sphi 0, %s54
      %s71 = sphi 0, %s55
      %s77 = sphi 0, %s79
      %s80 = sphi 0, %s77
      %s81 = sphi 0, %s80
      %s97 = sphi 0, %s81
      %s103 = sphi 0, %s105
      %s106 = sphi 0, %s103
      %s107 = sphi 0, %s106
      %s123 = sphi 0, %s107
      %s127 = sphi 0, %s127
      %s129 = sphi 0, %s127
      %s130 = sphi 0, %s129
      %s144 = sphi 0, %s130
      %s148 = sphi 0, %s148
      %s150 = sphi 0, %s148
      %s151 = sphi 0, %s150
      %s165 = sphi 0, %s151
      %s169 = sphi 0, %s169
      %s171 = sphi 0, %s169
      %s172 = sphi 0, %s171
      %s186 = sphi 0, %s172
      %s190 = sphi 0, %s190
      %s192 = sphi 0, %s190
      %s193 = sphi 0, %s192
      %s207 = sphi 0, %s193
      %s211 = sphi 0, %s211
      %s213 = sphi 0, %s211
      %s214 = sphi 0, %s213
      %s228 = sphi 0, %s214
      %s232 = sphi 0, %s232
      %s234 = sphi 0, %s232
      %s235 = sphi 0, %s234
      %s249 = sphi 0, %s235
      %s257 = sphi 0, %s259
      %s260 = sphi 0, %s257
      %s261 = sphi 0, %s260
      %s277 = sphi 0, %s261
    $region4: #{tpu_custom_call.1} parent=1 // loop_header_branch
      %30 = sbr.rel (%p28) target = $region8
    $region5: #{tpu_custom_call.1} parent=1 // loop_body
      %s32 = ssub.s32 %s27, 1
      %s33 = ssub.s32 %s27, 2
      %s40 = sadd.s32 1, %s35
      %p41 = scmp.ge.s32.totalorder %s40, 1
      %s42 = scalar_select %p41, 0, %s40
      %s43 = sadd.s32 1, %s34
      %s44 = scalar_select %p41, %s43, %s34
      %p45 = scmp.ge.s32.totalorder %s44, 2
      %s46 = scalar_select %p45, 0, %s44
      %s47 = ssub.s32 %s34, %s46
      %s48 = ssub.s32 %s35, %s42
      %s49 = sor.u32 %s47, %s48
      %p50 = scmp.eq.s32.totalorder %s49, 0
      %s52 = sadd.s32 %s51, 1
      %s53 = scalar_select %p50, %s51, %s52
      %p56 = pneg %p50
      %p57 = scmp.eq.s32.totalorder %s27, 1
      %p58 = por %p56, %p57
      %p59 = scmp.ne.s32.totalorder %s51, %s54
      %p60 = scmp.eq.s32.totalorder %s27, 0
      %p61 = por %p59, %p60
      %p62 = scmp.ne.s32.totalorder %s51, %s54
      %p63 = scmp.eq.s32.totalorder %s32, 1
      %p64 = por %p62, %p63
      %p65 = scmp.ne.s32.totalorder %s54, %s55
      %p66 = scmp.eq.s32.totalorder %s32, 0
      %p67 = por %p65, %p66
      %p68 = scmp.ne.s32.totalorder %s54, %s55
      %p69 = scmp.eq.s32.totalorder %s33, 1
      %p70 = por %p68, %p69
      %p72 = scmp.ne.s32.totalorder %s55, %s71
      %p73 = scmp.eq.s32.totalorder %s33, 0
      %p74 = por %p72, %p73
      %s75 = ssub.s32 %s34, %s46
      %p76 = scmp.eq.s32.totalorder %s75, 0
      %s78 = sadd.s32 %s77, 1
      %s79 = scalar_select %p76, %s77, %s78
      %p82 = pneg %p76
      %p83 = scmp.eq.s32.totalorder %s27, 1
      %p84 = por %p82, %p83
      %p85 = scmp.ne.s32.totalorder %s77, %s80
      %p86 = scmp.eq.s32.totalorder %s27, 0
      %p87 = por %p85, %p86
      %p88 = scmp.ne.s32.totalorder %s77, %s80
      %p89 = scmp.eq.s32.totalorder %s32, 1
      %p90 = por %p88, %p89
      %p91 = scmp.ne.s32.totalorder %s80, %s81
      %p92 = scmp.eq.s32.totalorder %s32, 0
      %p93 = por %p91, %p92
      %p94 = scmp.ne.s32.totalorder %s80, %s81
      %p95 = scmp.eq.s32.totalorder %s33, 1
      %p96 = por %p94, %p95
      %p98 = scmp.ne.s32.totalorder %s81, %s97
      %p99 = scmp.eq.s32.totalorder %s33, 0
      %p100 = por %p98, %p99
      %s101 = ssub.s32 %s34, %s46
      %p102 = scmp.eq.s32.totalorder %s101, 0
      %s104 = sadd.s32 %s103, 1
      %s105 = scalar_select %p102, %s103, %s104
      %p108 = pneg %p102
      %p109 = scmp.eq.s32.totalorder %s27, 1
      %p110 = por %p108, %p109
      %p111 = scmp.ne.s32.totalorder %s103, %s106
      %p112 = scmp.eq.s32.totalorder %s27, 0
      %p113 = por %p111, %p112
      %p114 = scmp.ne.s32.totalorder %s103, %s106
      %p115 = scmp.eq.s32.totalorder %s32, 1
      %p116 = por %p114, %p115
      %p117 = scmp.ne.s32.totalorder %s106, %s107
      %p118 = scmp.eq.s32.totalorder %s32, 0
      %p119 = por %p117, %p118
      %p120 = scmp.ne.s32.totalorder %s106, %s107
      %p121 = scmp.eq.s32.totalorder %s33, 1
      %p122 = por %p120, %p121
      %p124 = scmp.ne.s32.totalorder %s107, %s123
      %p125 = scmp.eq.s32.totalorder %s33, 0
      %p126 = por %p124, %p125
      %s128 = sadd.s32 %s127, 1
      %p131 = scmp.eq.s32.totalorder %s27, 1
      %p132 = scmp.ne.s32.totalorder %s127, %s129
      %p133 = scmp.eq.s32.totalorder %s27, 0
      %p134 = por %p132, %p133
      %p135 = scmp.ne.s32.totalorder %s127, %s129
      %p136 = scmp.eq.s32.totalorder %s32, 1
      %p137 = por %p135, %p136
      %p138 = scmp.ne.s32.totalorder %s129, %s130
      %p139 = scmp.eq.s32.totalorder %s32, 0
      %p140 = por %p138, %p139
      %p141 = scmp.ne.s32.totalorder %s129, %s130
      %p142 = scmp.eq.s32.totalorder %s33, 1
      %p143 = por %p141, %p142
      %p145 = scmp.ne.s32.totalorder %s130, %s144
      %p146 = scmp.eq.s32.totalorder %s33, 0
      %p147 = por %p145, %p146
      %s149 = sadd.s32 %s148, 1
      %p152 = scmp.eq.s32.totalorder %s27, 1
      %p153 = scmp.ne.s32.totalorder %s148, %s150
      %p154 = scmp.eq.s32.totalorder %s27, 0
      %p155 = por %p153, %p154
      %p156 = scmp.ne.s32.totalorder %s148, %s150
      %p157 = scmp.eq.s32.totalorder %s32, 1
      %p158 = por %p156, %p157
      %p159 = scmp.ne.s32.totalorder %s150, %s151
      %p160 = scmp.eq.s32.totalorder %s32, 0
      %p161 = por %p159, %p160
      %p162 = scmp.ne.s32.totalorder %s150, %s151
      %p163 = scmp.eq.s32.totalorder %s33, 1
      %p164 = por %p162, %p163
      %p166 = scmp.ne.s32.totalorder %s151, %s165
      %p167 = scmp.eq.s32.totalorder %s33, 0
      %p168 = por %p166, %p167
      %s170 = sadd.s32 %s169, 1
      %p173 = scmp.eq.s32.totalorder %s27, 1
      %p174 = scmp.ne.s32.totalorder %s169, %s171
      %p175 = scmp.eq.s32.totalorder %s27, 0
      %p176 = por %p174, %p175
      %p177 = scmp.ne.s32.totalorder %s169, %s171
      %p178 = scmp.eq.s32.totalorder %s32, 1
      %p179 = por %p177, %p178
      %p180 = scmp.ne.s32.totalorder %s171, %s172
      %p181 = scmp.eq.s32.totalorder %s32, 0
      %p182 = por %p180, %p181
      %p183 = scmp.ne.s32.totalorder %s171, %s172
      %p184 = scmp.eq.s32.totalorder %s33, 1
      %p185 = por %p183, %p184
      %p187 = scmp.ne.s32.totalorder %s172, %s186
      %p188 = scmp.eq.s32.totalorder %s33, 0
      %p189 = por %p187, %p188
      %s191 = sadd.s32 %s190, 1
      %p194 = scmp.eq.s32.totalorder %s27, 1
      %p195 = scmp.ne.s32.totalorder %s190, %s192
      %p196 = scmp.eq.s32.totalorder %s27, 0
      %p197 = por %p195, %p196
      %p198 = scmp.ne.s32.totalorder %s190, %s192
      %p199 = scmp.eq.s32.totalorder %s32, 1
      %p200 = por %p198, %p199
      %p201 = scmp.ne.s32.totalorder %s192, %s193
      %p202 = scmp.eq.s32.totalorder %s32, 0
      %p203 = por %p201, %p202
      %p204 = scmp.ne.s32.totalorder %s192, %s193
      %p205 = scmp.eq.s32.totalorder %s33, 1
      %p206 = por %p204, %p205
      %p208 = scmp.ne.s32.totalorder %s193, %s207
      %p209 = scmp.eq.s32.totalorder %s33, 0
      %p210 = por %p208, %p209
      %s212 = sadd.s32 %s211, 1
      %p215 = scmp.eq.s32.totalorder %s27, 1
      %p216 = scmp.ne.s32.totalorder %s211, %s213
      %p217 = scmp.eq.s32.totalorder %s27, 0
      %p218 = por %p216, %p217
      %p219 = scmp.ne.s32.totalorder %s211, %s213
      %p220 = scmp.eq.s32.totalorder %s32, 1
      %p221 = por %p219, %p220
      %p222 = scmp.ne.s32.totalorder %s213, %s214
      %p223 = scmp.eq.s32.totalorder %s32, 0
      %p224 = por %p222, %p223
      %p225 = scmp.ne.s32.totalorder %s213, %s214
      %p226 = scmp.eq.s32.totalorder %s33, 1
      %p227 = por %p225, %p226
      %p229 = scmp.ne.s32.totalorder %s214, %s228
      %p230 = scmp.eq.s32.totalorder %s33, 0
      %p231 = por %p229, %p230
      %s233 = sadd.s32 %s232, 1
      %p236 = scmp.eq.s32.totalorder %s27, 1
      %p237 = scmp.ne.s32.totalorder %s232, %s234
      %p238 = scmp.eq.s32.totalorder %s27, 0
      %p239 = por %p237, %p238
      %p240 = scmp.ne.s32.totalorder %s232, %s234
      %p241 = scmp.eq.s32.totalorder %s32, 1
      %p242 = por %p240, %p241
      %p243 = scmp.ne.s32.totalorder %s234, %s235
      %p244 = scmp.eq.s32.totalorder %s32, 0
      %p245 = por %p243, %p244
      %p246 = scmp.ne.s32.totalorder %s234, %s235
      %p247 = scmp.eq.s32.totalorder %s33, 1
      %p248 = por %p246, %p247
      %p250 = scmp.ne.s32.totalorder %s235, %s249
      %p251 = scmp.eq.s32.totalorder %s33, 0
      %p252 = por %p250, %p251
      %s253 = ssub.s32 %s34, %s46
      %s254 = ssub.s32 %s35, %s42
      %s255 = sor.u32 %s253, %s254
      %p256 = scmp.eq.s32.totalorder %s255, 0
      %s258 = sadd.s32 %s257, 1
      %s259 = scalar_select %p256, %s257, %s258
      %p262 = pneg %p256
      %p263 = scmp.eq.s32.totalorder %s27, 1
      %p264 = por %p262, %p263
      %p265 = scmp.ne.s32.totalorder %s257, %s260
      %p266 = scmp.eq.s32.totalorder %s27, 0
      %p267 = por %p265, %p266
      %p268 = scmp.ne.s32.totalorder %s257, %s260
      %p269 = scmp.eq.s32.totalorder %s32, 1
      %p270 = por %p268, %p269
      %p271 = scmp.ne.s32.totalorder %s260, %s261
      %p272 = scmp.eq.s32.totalorder %s32, 0
      %p273 = por %p271, %p272
      %p274 = scmp.ne.s32.totalorder %s260, %s261
      %p275 = scmp.eq.s32.totalorder %s33, 1
      %p276 = por %p274, %p275
      %p278 = scmp.ne.s32.totalorder %s261, %s277
      %p279 = scmp.eq.s32.totalorder %s33, 0
      %p280 = por %p278, %p279
      %p281 = scmp.le.s32.totalorder 1, %s27
      %p282 = scmp.lt.s32.totalorder %s27, 3
      %p283 = pnand %p281, %p282
      %p284 = pneg %p283
      // Predicated region
      $region9: #{tpu_custom_call.1} parent=5 // pred_check
        _
      $region10: #{tpu_custom_call.1} parent=5 // pred_check_branch
        %286 = sbr.rel (%p283) target = $region12
      $region11: #{tpu_custom_call.1} parent=5 // pred_region
        %s287 = ssub.s32 %s27, 1
        // Predicated region
        $region13: #{tpu_custom_call.1} parent=11 // pred_check
          %p288 = pneg %p140
        $region14: #{tpu_custom_call.1} parent=11 // pred_check_branch
          %290 = sbr.rel (%p288) target = $region16
        $region15: #{tpu_custom_call.1} parent=11 // pred_region
          %s292 = ssub.s32 2048, 2048
          %293 = vsyncadd [#allocation9], %s292
          %s294 = sshll.u32 [#allocation8], 4
          %s295 = int_to_ptr.vmem [resolvable:$true] %s294
          %300 = dma.hbm_to_vmem [thread:$0]  %s3, 2048, %s295, [#allocation9], 128, 128, 8
        $region16: #{tpu_custom_call.1} parent=11 // pred_fallthru
          _
        // Predicated region
        $region17: #{tpu_custom_call.1} parent=11 // pred_check
          %p301 = pneg %p161
        $region18: #{tpu_custom_call.1} parent=11 // pred_check_branch
          %303 = sbr.rel (%p301) target = $region20
        $region19: #{tpu_custom_call.1} parent=11 // pred_region
          %s305 = ssub.s32 2048, 2048
          %306 = vsyncadd [#allocation9], %s305
          %s307 = sshll.u32 [#allocation10], 4
          %s308 = int_to_ptr.vmem [resolvable:$true] %s307
          %313 = dma.hbm_to_vmem [thread:$0]  %s4, 2048, %s308, [#allocation9], 128, 128, 8
        $region20: #{tpu_custom_call.1} parent=11 // pred_fallthru
          _
        // Predicated region
        $region21: #{tpu_custom_call.1} parent=11 // pred_check
          %p314 = pneg %p182
        $region22: #{tpu_custom_call.1} parent=11 // pred_check_branch
          %316 = sbr.rel (%p314) target = $region24
        $region23: #{tpu_custom_call.1} parent=11 // pred_region
          %s318 = ssub.s32 2048, 2048
          %319 = vsyncadd [#allocation12], %s318
          %s320 = sshll.u32 [#allocation11], 4
          %s321 = int_to_ptr.vmem [resolvable:$true] %s320
          %326 = dma.hbm_to_vmem [thread:$0]  %s5, 2048, %s321, [#allocation12], 128, 128, 8
        $region24: #{tpu_custom_call.1} parent=11 // pred_fallthru
          _
        // Predicated region
        $region25: #{tpu_custom_call.1} parent=11 // pred_check
          %p327 = pneg %p203
        $region26: #{tpu_custom_call.1} parent=11 // pred_check_branch
          %329 = sbr.rel (%p327) target = $region28
        $region27: #{tpu_custom_call.1} parent=11 // pred_region
          %s331 = ssub.s32 2048, 2048
          %332 = vsyncadd [#allocation12], %s331
          %s333 = sshll.u32 [#allocation13], 4
          %s334 = int_to_ptr.vmem [resolvable:$true] %s333
          %339 = dma.hbm_to_vmem [thread:$0]  %s6, 2048, %s334, [#allocation12], 64, 64, 4
        $region28: #{tpu_custom_call.1} parent=11 // pred_fallthru
          _
        // Predicated region
        $region29: #{tpu_custom_call.1} parent=11 // pred_check
          %p340 = pneg %p224
        $region30: #{tpu_custom_call.1} parent=11 // pred_check_branch
          %342 = sbr.rel (%p340) target = $region32
        $region31: #{tpu_custom_call.1} parent=11 // pred_region
          %s344 = ssub.s32 1024, 1024
          %345 = vsyncadd [#allocation15], %s344
          %s346 = sshll.u32 [#allocation14], 4
          %s347 = int_to_ptr.vmem [resolvable:$true] %s346
          %352 = dma.hbm_to_vmem [thread:$0]  %s7, 1024, %s347, [#allocation15], 64, 64, 4
        $region32: #{tpu_custom_call.1} parent=11 // pred_fallthru
          _
        // Predicated region
        $region33: #{tpu_custom_call.1} parent=11 // pred_check
          %p353 = pneg %p245
        $region34: #{tpu_custom_call.1} parent=11 // pred_check_branch
          %355 = sbr.rel (%p353) target = $region36
        $region35: #{tpu_custom_call.1} parent=11 // pred_region
          %s357 = ssub.s32 1024, 1024
          %358 = vsyncadd [#allocation15], %s357
          %s359 = sshll.u32 [#allocation16], 4
          %s360 = int_to_ptr.vmem [resolvable:$true] %s359
          %365 = dma.hbm_to_vmem [thread:$0]  %s8, 1024, %s360, [#allocation15], 64, 64, 4
        $region36: #{tpu_custom_call.1} parent=11 // pred_fallthru
          _
      $region12: #{tpu_custom_call.1} parent=5 // pred_fallthru
        _
      %p366 = scmp.lt.s32.totalorder %s27, 2
      // Predicated region
      $region37: #{tpu_custom_call.1} parent=5 // pred_check
        %p367 = pneg %p366
      $region38: #{tpu_custom_call.1} parent=5 // pred_check_branch
        %369 = sbr.rel (%p367) target = $region40
      $region39: #{tpu_custom_call.1} parent=5 // pred_region
        // Predicated region
        $region41: #{tpu_custom_call.1} parent=39 // pred_check
          %p370 = pneg %p61
        $region42: #{tpu_custom_call.1} parent=39 // pred_check_branch
          %372 = sbr.rel (%p370) target = $region44
        $region43: #{tpu_custom_call.1} parent=39 // pred_region
          %s373 = sand.u32 %s51, 1
          %s374 = scalar_lea.sflag [#allocation3], %s373
          %s375 = sand.u32 %s51, 1
          %s376 = smul.addr %s375, 64
          %s377 = scalar_lea.vmem [#allocation2], %s376
          %s378 = smul.u32 16, %s35
          %s380 = ssub.s32 1024, 1024
          %381 = vsyncadd %s374, %s380
          %s382 = smul.addr %s34, 16
          %s383 = sadd.s32 %s378, %s382
          %s384 = smul.addr %s383, 64
          %s385 = scalar_lea.hbm %s0, %s384
          %s386 = sshll.u32 %s377, 4
          %s387 = int_to_ptr.vmem [resolvable:$true] %s386
          %392 = dma.hbm_to_vmem [thread:$0]  %s385, 1024, %s387, %s374, 64, 64, 4
        $region44: #{tpu_custom_call.1} parent=39 // pred_fallthru
          _
        // Predicated region
        $region45: #{tpu_custom_call.1} parent=39 // pred_check
          %p393 = pneg %p87
        $region46: #{tpu_custom_call.1} parent=39 // pred_check_branch
          %395 = sbr.rel (%p393) target = $region48
        $region47: #{tpu_custom_call.1} parent=39 // pred_region
          %s396 = sand.u32 %s27, 1
          %s397 = scalar_lea.sflag [#allocation6], %s396
          %s398 = sand.u32 %s77, 1
          %s399 = smul.addr %s398, 64
          %s400 = scalar_lea.vmem [#allocation5], %s399
          %s402 = ssub.s32 1024, 1024
          %403 = vsyncadd %s397, %s402
          %s404 = smul.addr %s34, 16
          %s405 = smul.addr %s404, 64
          %s406 = scalar_lea.hbm %s1, %s405
          %s407 = sshll.u32 %s400, 4
          %s408 = int_to_ptr.vmem [resolvable:$true] %s407
          %413 = dma.hbm_to_vmem [thread:$0]  %s406, 1024, %s408, %s397, 64, 64, 4
        $region48: #{tpu_custom_call.1} parent=39 // pred_fallthru
          _
        // Predicated region
        $region49: #{tpu_custom_call.1} parent=39 // pred_check
          %p414 = pneg %p113
        $region50: #{tpu_custom_call.1} parent=39 // pred_check_branch
          %416 = sbr.rel (%p414) target = $region52
        $region51: #{tpu_custom_call.1} parent=39 // pred_region
          %s417 = sand.u32 %s27, 1
          %s418 = scalar_lea.sflag [#allocation6], %s417
          %s419 = sand.u32 %s103, 1
          %s420 = smul.addr %s419, 64
          %s421 = scalar_lea.vmem [#allocation7], %s420
          %s423 = ssub.s32 1024, 1024
          %424 = vsyncadd %s418, %s423
          %s425 = smul.addr %s34, 16
          %s426 = smul.addr %s425, 64
          %s427 = scalar_lea.hbm %s2, %s426
          %s428 = sshll.u32 %s421, 4
          %s429 = int_to_ptr.vmem [resolvable:$true] %s428
          %434 = dma.hbm_to_vmem [thread:$0]  %s427, 1024, %s429, %s418, 64, 64, 4
        $region52: #{tpu_custom_call.1} parent=39 // pred_fallthru
          _
      $region40: #{tpu_custom_call.1} parent=5 // pred_fallthru
        _
      %p435 = scmp.le.s32.totalorder 1, %s27
      %p436 = scmp.lt.s32.totalorder %s27, 3
      %p437 = pnand %p435, %p436
      %p438 = pneg %p437
      // Predicated region
      $region53: #{tpu_custom_call.1} parent=5 // pred_check
        _
      $region54: #{tpu_custom_call.1} parent=5 // pred_check_branch
        %440 = sbr.rel (%p437) target = $region56
      $region55: #{tpu_custom_call.1} parent=5 // pred_region
        %s441 = ssub.s32 %s27, 1
        %s442 = sand.u32 %s54, 1
        %s443 = scalar_lea.sflag [#allocation3], %s442
        %s444 = sand.u32 %s54, 1
        %s445 = smul.addr %s444, 64
        %s446 = scalar_lea.vmem [#allocation2], %s445
        // Predicated region
        $region57: #{tpu_custom_call.1} parent=55 // pred_check
          %p447 = pneg %p67
        $region58: #{tpu_custom_call.1} parent=55 // pred_check_branch
          %449 = sbr.rel (%p447) target = $region60
        $region59: #{tpu_custom_call.1} parent=55 // pred_region
          %450 = dma.done %s443, 1024
        $region60: #{tpu_custom_call.1} parent=55 // pred_fallthru
          _
        %s451 = sand.u32 %s32, 1
        %s452 = scalar_lea.sflag [#allocation6], %s451
        %s453 = sand.u32 %s80, 1
        %s454 = smul.addr %s453, 64
        %s455 = scalar_lea.vmem [#allocation5], %s454
        // Predicated region
        $region61: #{tpu_custom_call.1} parent=55 // pred_check
          %p456 = pneg %p93
        $region62: #{tpu_custom_call.1} parent=55 // pred_check_branch
          %458 = sbr.rel (%p456) target = $region64
        $region63: #{tpu_custom_call.1} parent=55 // pred_region
          %459 = dma.done %s452, 1024
        $region64: #{tpu_custom_call.1} parent=55 // pred_fallthru
          _
        %s460 = sand.u32 %s32, 1
        %s461 = scalar_lea.sflag [#allocation6], %s460
        %s462 = sand.u32 %s106, 1
        %s463 = smul.addr %s462, 64
        %s464 = scalar_lea.vmem [#allocation7], %s463
        // Predicated region
        $region65: #{tpu_custom_call.1} parent=55 // pred_check
          %p465 = pneg %p119
        $region66: #{tpu_custom_call.1} parent=55 // pred_check_branch
          %467 = sbr.rel (%p465) target = $region68
        $region67: #{tpu_custom_call.1} parent=55 // pred_region
          %468 = dma.done %s461, 1024
        $region68: #{tpu_custom_call.1} parent=55 // pred_fallthru
          _
        // Predicated region
        $region69: #{tpu_custom_call.1} parent=55 // pred_check
          %p469 = pneg %p140
        $region70: #{tpu_custom_call.1} parent=55 // pred_check_branch
          %471 = sbr.rel (%p469) target = $region72
        $region71: #{tpu_custom_call.1} parent=55 // pred_region
          %472 = dma.done [#allocation9], 2048
        $region72: #{tpu_custom_call.1} parent=55 // pred_fallthru
          _
        // Predicated region
        $region73: #{tpu_custom_call.1} parent=55 // pred_check
          %p473 = pneg %p161
        $region74: #{tpu_custom_call.1} parent=55 // pred_check_branch
          %475 = sbr.rel (%p473) target = $region76
        $region75: #{tpu_custom_call.1} parent=55 // pred_region
          %476 = dma.done [#allocation9], 2048
        $region76: #{tpu_custom_call.1} parent=55 // pred_fallthru
          _
        // Predicated region
        $region77: #{tpu_custom_call.1} parent=55 // pred_check
          %p477 = pneg %p182
        $region78: #{tpu_custom_call.1} parent=55 // pred_check_branch
          %479 = sbr.rel (%p477) target = $region80
        $region79: #{tpu_custom_call.1} parent=55 // pred_region
          %480 = dma.done [#allocation12], 2048
        $region80: #{tpu_custom_call.1} parent=55 // pred_fallthru
          _
        // Predicated region
        $region81: #{tpu_custom_call.1} parent=55 // pred_check
          %p481 = pneg %p203
        $region82: #{tpu_custom_call.1} parent=55 // pred_check_branch
          %483 = sbr.rel (%p481) target = $region84
        $region83: #{tpu_custom_call.1} parent=55 // pred_region
          %484 = dma.done [#allocation12], 2048
        $region84: #{tpu_custom_call.1} parent=55 // pred_fallthru
          _
        // Predicated region
        $region85: #{tpu_custom_call.1} parent=55 // pred_check
          %p485 = pneg %p224
        $region86: #{tpu_custom_call.1} parent=55 // pred_check_branch
          %487 = sbr.rel (%p485) target = $region88
        $region87: #{tpu_custom_call.1} parent=55 // pred_region
          %488 = dma.done [#allocation15], 1024
        $region88: #{tpu_custom_call.1} parent=55 // pred_fallthru
          _
        // Predicated region
        $region89: #{tpu_custom_call.1} parent=55 // pred_check
          %p489 = pneg %p245
        $region90: #{tpu_custom_call.1} parent=55 // pred_check_branch
          %491 = sbr.rel (%p489) target = $region92
        $region91: #{tpu_custom_call.1} parent=55 // pred_region
          %492 = dma.done [#allocation15], 1024
        $region92: #{tpu_custom_call.1} parent=55 // pred_fallthru
          _
        %s493 = sand.u32 %s54, 1
        %s494 = scalar_lea.sflag [#allocation3], %s493
        %s495 = sand.u32 %s54, 1
        %s496 = smul.addr %s495, 64
        %s497 = scalar_lea.vmem [#allocation2], %s496
        %p498 = pneg %p67
        %p499 = pneg %p64
        %s500 = sand.u32 %s32, 1
        %s501 = scalar_lea.sflag [#allocation6], %s500
        %s502 = sand.u32 %s80, 1
        %s503 = smul.addr %s502, 64
        %s504 = scalar_lea.vmem [#allocation5], %s503
        %p505 = pneg %p93
        %p506 = pneg %p90
        %s507 = sand.u32 %s32, 1
        %s508 = scalar_lea.sflag [#allocation6], %s507
        %s509 = sand.u32 %s106, 1
        %s510 = smul.addr %s509, 64
        %s511 = scalar_lea.vmem [#allocation7], %s510
        %p512 = pneg %p119
        %p513 = pneg %p116
        %p514 = pneg %p140
        %p515 = pneg %p137
        %p516 = pneg %p161
        %p517 = pneg %p158
        %p518 = pneg %p182
        %p519 = pneg %p179
        %p520 = pneg %p203
        %p521 = pneg %p200
        %p522 = pneg %p224
        %p523 = pneg %p221
        %p524 = pneg %p245
        %p525 = pneg %p242
        %p526 = pneg %p273
        %p527 = pneg %p270
        %s528 = sand.u32 %s260, 1
        %s529 = scalar_lea.sflag [#allocation4], %s528
        %s530 = sand.u32 %s260, 1
        %s531 = smul.addr %s530, 64
        %s532 = scalar_lea.vmem [#allocation17], %s531
        %s533 = smul.u32 16, %s37
        %s534 = smul.u32 16, %s37
        %v536 = vld [vmem:[%s446] sm:$0xf]
        %v537 = vld [vmem:[%s446 + $0x4] sm:$0xf]
        %v538 = vld [vmem:[%s446 + $0x8] sm:$0xf]
        %v539 = vld [vmem:[%s446 + $0xc] sm:$0xf]
        %v540 = vld [vmem:[%s446 + $0x10] sm:$0xf]
        %v541 = vld [vmem:[%s446 + $0x14] sm:$0xf]
        %v542 = vld [vmem:[%s446 + $0x18] sm:$0xf]
        %v543 = vld [vmem:[%s446 + $0x1c] sm:$0xf]
        %v544 = vld [vmem:[%s446 + $0x20] sm:$0xf]
        %v545 = vld [vmem:[%s446 + $0x24] sm:$0xf]
        %v546 = vld [vmem:[%s446 + $0x28] sm:$0xf]
        %v547 = vld [vmem:[%s446 + $0x2c] sm:$0xf]
        %v548 = vld [vmem:[%s446 + $0x30] sm:$0xf]
        %v549 = vld [vmem:[%s446 + $0x34] sm:$0xf]
        %v550 = vld [vmem:[%s446 + $0x38] sm:$0xf]
        %v551 = vld [vmem:[%s446 + $0x3c] sm:$0xf]
        %v552 = vld [vmem:[#allocation8] sm:$0xff]
        %v553 = vld [vmem:[#allocation8 + $0x8] sm:$0xff]
        %v554 = vld [vmem:[#allocation8 + $0x10] sm:$0xff]
        %v555 = vld [vmem:[#allocation8 + $0x18] sm:$0xff]
        %v556 = vld [vmem:[#allocation8 + $0x20] sm:$0xff]
        %v557 = vld [vmem:[#allocation8 + $0x28] sm:$0xff]
        %v558 = vld [vmem:[#allocation8 + $0x30] sm:$0xff]
        %v559 = vld [vmem:[#allocation8 + $0x38] sm:$0xff]
        %v560 = vld [vmem:[#allocation8 + $0x40] sm:$0xff]
        %v561 = vld [vmem:[#allocation8 + $0x48] sm:$0xff]
        %v562 = vld [vmem:[#allocation8 + $0x50] sm:$0xff]
        %v563 = vld [vmem:[#allocation8 + $0x58] sm:$0xff]
        %v564 = vld [vmem:[#allocation8 + $0x60] sm:$0xff]
        %v565 = vld [vmem:[#allocation8 + $0x68] sm:$0xff]
        %v566 = vld [vmem:[#allocation8 + $0x70] sm:$0xff]
        %v567 = vld [vmem:[#allocation8 + $0x78] sm:$0xff]
        %v584 = vunpack.c.l.b16 %v536
        %v585 = vunpack.c.l.b16 %v537
        %v586 = vunpack.c.l.b16 %v538
        %v587 = vunpack.c.l.b16 %v539
        %v588 = vunpack.c.l.b16 %v540
        %v589 = vunpack.c.l.b16 %v541
        %v590 = vunpack.c.l.b16 %v542
        %v591 = vunpack.c.l.b16 %v543
        %v592 = vunpack.c.l.b16 %v544
        %v593 = vunpack.c.l.b16 %v545
        %v594 = vunpack.c.l.b16 %v546
        %v595 = vunpack.c.l.b16 %v547
        %v596 = vunpack.c.l.b16 %v548
        %v597 = vunpack.c.l.b16 %v549
        %v598 = vunpack.c.l.b16 %v550
        %v599 = vunpack.c.l.b16 %v551
        %v600 = vpack.c.b16 %v585, %v584
        %v601 = vpack.c.b16 %v587, %v586
        %v602 = vpack.c.b16 %v589, %v588
        %v603 = vpack.c.b16 %v591, %v590
        %v604 = vpack.c.b16 %v593, %v592
        %v605 = vpack.c.b16 %v595, %v594
        %v606 = vpack.c.b16 %v597, %v596
        %v607 = vpack.c.b16 %v599, %v598
        %v632 = vunpack.c.l.b16 %v552
        %v633 = vunpack.c.h.b16 %v552
        %v634 = vunpack.c.l.b16 %v553
        %v635 = vunpack.c.h.b16 %v553
        %v636 = vunpack.c.l.b16 %v554
        %v637 = vunpack.c.h.b16 %v554
        %v638 = vunpack.c.l.b16 %v555
        %v639 = vunpack.c.h.b16 %v555
        %v640 = vunpack.c.l.b16 %v556
        %v641 = vunpack.c.h.b16 %v556
        %v642 = vunpack.c.l.b16 %v557
        %v643 = vunpack.c.h.b16 %v557
        %v644 = vunpack.c.l.b16 %v558
        %v645 = vunpack.c.h.b16 %v558
        %v646 = vunpack.c.l.b16 %v559
        %v647 = vunpack.c.h.b16 %v559
        %v648 = vunpack.c.l.b16 %v560
        %v649 = vunpack.c.h.b16 %v560
        %v650 = vunpack.c.l.b16 %v561
        %v651 = vunpack.c.h.b16 %v561
        %v652 = vunpack.c.l.b16 %v562
        %v653 = vunpack.c.h.b16 %v562
        %v654 = vunpack.c.l.b16 %v563
        %v655 = vunpack.c.h.b16 %v563
        %v656 = vunpack.c.l.b16 %v564
        %v657 = vunpack.c.h.b16 %v564
        %v658 = vunpack.c.l.b16 %v565
        %v659 = vunpack.c.h.b16 %v565
        %v660 = vunpack.c.l.b16 %v566
        %v661 = vunpack.c.h.b16 %v566
        %v662 = vunpack.c.l.b16 %v567
        %v663 = vunpack.c.h.b16 %v567
        %v664 = vpack.c.b16 %v634, %v632
        %v665 = vpack.c.b16 %v635, %v633
        %v666 = vpack.c.b16 %v638, %v636
        %v667 = vpack.c.b16 %v639, %v637
        %v668 = vpack.c.b16 %v642, %v640
        %v669 = vpack.c.b16 %v643, %v641
        %v670 = vpack.c.b16 %v646, %v644
        %v671 = vpack.c.b16 %v647, %v645
        %v672 = vpack.c.b16 %v650, %v648
        %v673 = vpack.c.b16 %v651, %v649
        %v674 = vpack.c.b16 %v654, %v652
        %v675 = vpack.c.b16 %v655, %v653
        %v676 = vpack.c.b16 %v658, %v656
        %v677 = vpack.c.b16 %v659, %v657
        %v678 = vpack.c.b16 %v662, %v660
        %v679 = vpack.c.b16 %v663, %v661
        %696 = vmatprep.subr.bf16.mxu0 %v665
        %697 = vmatpush1.bf16.msra.mxu0 %v664
        %698 = vmatprep.subr.bf16.mxu0 %v667
        %699 = vmatpush1.bf16.msra.mxu0 %v666
        %700 = vmatprep.subr.bf16.mxu0 %v669
        %701 = vmatpush1.bf16.msra.mxu0 %v668
        %702 = vmatprep.subr.bf16.mxu0 %v671
        %703 = vmatpush1.bf16.msra.mxu0 %v670
        %704 = vmatprep.subr.bf16.mxu0 %v673
        %705 = vmatpush1.bf16.msra.mxu0 %v672
        %706 = vmatprep.subr.bf16.mxu0 %v675
        %707 = vmatpush1.bf16.msra.mxu0 %v674
        %708 = vmatprep.subr.bf16.mxu0 %v677
        %709 = vmatpush1.bf16.msra.mxu0 %v676
        %710 = vmatprep.subr.bf16.mxu0 %v679
        %711 = vmatpush1.bf16.msra.mxu0 %v678
        %712 = vmatprep.subr.bf16.mxu0 0
        %713 = vmatpush1.bf16.msra.mxu0 0
        %714 = vmatprep.subr.bf16.mxu0 0
        %715 = vmatpush1.bf16.msra.mxu0 0
        %716 = vmatprep.subr.bf16.mxu0 0
        %717 = vmatpush1.bf16.msra.mxu0 0
        %718 = vmatprep.subr.bf16.mxu0 0
        %719 = vmatpush1.bf16.msra.mxu0 0
        %720 = vmatprep.subr.bf16.mxu0 0
        %721 = vmatpush1.bf16.msra.mxu0 0
        %722 = vmatprep.subr.bf16.mxu0 0
        %723 = vmatpush1.bf16.msra.mxu0 0
        %724 = vmatprep.subr.bf16.mxu0 0
        %725 = vmatpush1.bf16.msra.mxu0 0
        %726 = vmatprep.subr.bf16.mxu0 0
        %727 = vmatpush1.bf16.msra.mxu0 0
        %728 = vmatprep.mubr.bf16.mxu0 0
        %729 = vmatmul.mubr.bf16.gmra.mrb[0].mxu0 %v600
        %v730 = vpop.f32.mrb[0].mxu0
        %v731 = vadd.f32 0.0, %v730
        %v732 = vpop.f32.mrb[0].mxu0
        %v733 = vadd.f32 0.0, %v732
        %v734 = vpop.f32.mrb[0].mxu0
        %v735 = vadd.f32 0.0, %v734
        %v736 = vpop.f32.mrb[0].mxu0
        %v737 = vadd.f32 0.0, %v736
        %738 = vmatprep.mubr.bf16.mxu0 0
        %739 = vmatmul.mubr.bf16.gmra.mrb[0].mxu0 %v601
        %v740 = vpop.f32.mrb[0].mxu0
        %v741 = vadd.f32 0.0, %v740
        %v742 = vpop.f32.mrb[0].mxu0
        %v743 = vadd.f32 0.0, %v742
        %v744 = vpop.f32.mrb[0].mxu0
        %v745 = vadd.f32 0.0, %v744
        %v746 = vpop.f32.mrb[0].mxu0
        %v747 = vadd.f32 0.0, %v746
        %748 = vmatprep.mubr.bf16.mxu0 0
        %749 = vmatmul.mubr.bf16.gmra.mrb[0].mxu0 %v602
        %v750 = vpop.f32.mrb[0].mxu0
        %v751 = vadd.f32 0.0, %v750
        %v752 = vpop.f32.mrb[0].mxu0
        %v753 = vadd.f32 0.0, %v752
        %v754 = vpop.f32.mrb[0].mxu0
        %v755 = vadd.f32 0.0, %v754
        %v756 = vpop.f32.mrb[0].mxu0
        %v757 = vadd.f32 0.0, %v756
        %758 = vmatprep.mubr.bf16.mxu0 0
        %759 = vmatmul.mubr.bf16.gmra.mrb[0].mxu0 %v603
        %v760 = vpop.f32.mrb[0].mxu0
        %v761 = vadd.f32 0.0, %v760
        %v762 = vpop.f32.mrb[0].mxu0
        %v763 = vadd.f32 0.0, %v762
        %v764 = vpop.f32.mrb[0].mxu0
        %v765 = vadd.f32 0.0, %v764
        %v766 = vpop.f32.mrb[0].mxu0
        %v767 = vadd.f32 0.0, %v766
        %768 = vmatprep.mubr.bf16.mxu0 0
        %769 = vmatmul.mubr.bf16.gmra.mrb[0].mxu0 %v604
        %v770 = vpop.f32.mrb[0].mxu0
        %v771 = vadd.f32 0.0, %v770
        %v772 = vpop.f32.mrb[0].mxu0
        %v773 = vadd.f32 0.0, %v772
        %v774 = vpop.f32.mrb[0].mxu0
        %v775 = vadd.f32 0.0, %v774
        %v776 = vpop.f32.mrb[0].mxu0
        %v777 = vadd.f32 0.0, %v776
        %778 = vmatprep.mubr.bf16.mxu0 0
        %779 = vmatmul.mubr.bf16.gmra.mrb[0].mxu0 %v605
        %v780 = vpop.f32.mrb[0].mxu0
        %v781 = vadd.f32 0.0, %v780
        %v782 = vpop.f32.mrb[0].mxu0
        %v783 = vadd.f32 0.0, %v782
        %v784 = vpop.f32.mrb[0].mxu0
        %v785 = vadd.f32 0.0, %v784
        %v786 = vpop.f32.mrb[0].mxu0
        %v787 = vadd.f32 0.0, %v786
        %788 = vmatprep.mubr.bf16.mxu0 0
        %789 = vmatmul.mubr.bf16.gmra.mrb[0].mxu0 %v606
        %v790 = vpop.f32.mrb[0].mxu0
        %v791 = vadd.f32 0.0, %v790
        %v792 = vpop.f32.mrb[0].mxu0
        %v793 = vadd.f32 0.0, %v792
        %v794 = vpop.f32.mrb[0].mxu0
        %v795 = vadd.f32 0.0, %v794
        %v796 = vpop.f32.mrb[0].mxu0
        %v797 = vadd.f32 0.0, %v796
        %798 = vmatprep.mubr.bf16.mxu0 0
        %799 = vmatmul.mubr.bf16.gmra.mrb[0].mxu0 %v607
        %v800 = vpop.f32.mrb[0].mxu0
        %v801 = vadd.f32 0.0, %v800
        %v802 = vpop.f32.mrb[0].mxu0
        %v803 = vadd.f32 0.0, %v802
        %v804 = vpop.f32.mrb[0].mxu0
        %v805 = vadd.f32 0.0, %v804
        %v806 = vpop.f32.mrb[0].mxu0
        %v807 = vadd.f32 0.0, %v806
        %808 = vdwg.mxu0
        %v809 = vld [vmem:[%s455] sm:$0xf]
        %v810 = vld [vmem:[%s455 + $0x4] sm:$0xf]
        %v811 = vld [vmem:[%s455 + $0x8] sm:$0xf]
        %v812 = vld [vmem:[%s455 + $0xc] sm:$0xf]
        %v813 = vld [vmem:[%s455 + $0x10] sm:$0xf]
        %v814 = vld [vmem:[%s455 + $0x14] sm:$0xf]
        %v815 = vld [vmem:[%s455 + $0x18] sm:$0xf]
        %v816 = vld [vmem:[%s455 + $0x1c] sm:$0xf]
        %v817 = vld [vmem:[%s455 + $0x20] sm:$0xf]
        %v818 = vld [vmem:[%s455 + $0x24] sm:$0xf]
        %v819 = vld [vmem:[%s455 + $0x28] sm:$0xf]
        %v820 = vld [vmem:[%s455 + $0x2c] sm:$0xf]
        %v821 = vld [vmem:[%s455 + $0x30] sm:$0xf]
        %v822 = vld [vmem:[%s455 + $0x34] sm:$0xf]
        %v823 = vld [vmem:[%s455 + $0x38] sm:$0xf]
        %v824 = vld [vmem:[%s455 + $0x3c] sm:$0xf]
        %v825 = vld [vmem:[#allocation10] sm:$0xff]
        %v826 = vld [vmem:[#allocation10 + $0x8] sm:$0xff]
        %v827 = vld [vmem:[#allocation10 + $0x10] sm:$0xff]
        %v828 = vld [vmem:[#allocation10 + $0x18] sm:$0xff]
        %v829 = vld [vmem:[#allocation10 + $0x20] sm:$0xff]
        %v830 = vld [vmem:[#allocation10 + $0x28] sm:$0xff]
        %v831 = vld [vmem:[#allocation10 + $0x30] sm:$0xff]
        %v832 = vld [vmem:[#allocation10 + $0x38] sm:$0xff]
        %v833 = vld [vmem:[#allocation10 + $0x40] sm:$0xff]
        %v834 = vld [vmem:[#allocation10 + $0x48] sm:$0xff]
        %v835 = vld [vmem:[#allocation10 + $0x50] sm:$0xff]
        %v836 = vld [vmem:[#allocation10 + $0x58] sm:$0xff]
        %v837 = vld [vmem:[#allocation10 + $0x60] sm:$0xff]
        %v838 = vld [vmem:[#allocation10 + $0x68] sm:$0xff]
        %v839 = vld [vmem:[#allocation10 + $0x70] sm:$0xff]
        %v840 = vld [vmem:[#allocation10 + $0x78] sm:$0xff]
        %v857 = vunpack.c.l.b16 %v809
        %v858 = vunpack.c.l.b16 %v810
        %v859 = vunpack.c.l.b16 %v811
        %v860 = vunpack.c.l.b16 %v812
        %v861 = vunpack.c.l.b16 %v813
        %v862 = vunpack.c.l.b16 %v814
        %v863 = vunpack.c.l.b16 %v815
        %v864 = vunpack.c.l.b16 %v816
        %v865 = vunpack.c.l.b16 %v817
        %v866 = vunpack.c.l.b16 %v818
        %v867 = vunpack.c.l.b16 %v819
        %v868 = vunpack.c.l.b16 %v820
        %v869 = vunpack.c.l.b16 %v821
        %v870 = vunpack.c.l.b16 %v822
        %v871 = vunpack.c.l.b16 %v823
        %v872 = vunpack.c.l.b16 %v824
        %v873 = vpack.c.b16 %v858, %v857
        %v874 = vpack.c.b16 %v860, %v859
        %v875 = vpack.c.b16 %v862, %v861
        %v876 = vpack.c.b16 %v864, %v863
        %v877 = vpack.c.b16 %v866, %v865
        %v878 = vpack.c.b16 %v868, %v867
        %v879 = vpack.c.b16 %v870, %v869
        %v880 = vpack.c.b16 %v872, %v871
        %v905 = vunpack.c.l.b16 %v825
        %v906 = vunpack.c.h.b16 %v825
        %v907 = vunpack.c.l.b16 %v826
        %v908 = vunpack.c.h.b16 %v826
        %v909 = vunpack.c.l.b16 %v827
        %v910 = vunpack.c.h.b16 %v827
        %v911 = vunpack.c.l.b16 %v828
        %v912 = vunpack.c.h.b16 %v828
        %v913 = vunpack.c.l.b16 %v829
        %v914 = vunpack.c.h.b16 %v829
        %v915 = vunpack.c.l.b16 %v830
        %v916 = vunpack.c.h.b16 %v830
        %v917 = vunpack.c.l.b16 %v831
        %v918 = vunpack.c.h.b16 %v831
        %v919 = vunpack.c.l.b16 %v832
        %v920 = vunpack.c.h.b16 %v832
        %v921 = vunpack.c.l.b16 %v833
        %v922 = vunpack.c.h.b16 %v833
        %v923 = vunpack.c.l.b16 %v834
        %v924 = vunpack.c.h.b16 %v834
        %v925 = vunpack.c.l.b16 %v835
        %v926 = vunpack.c.h.b16 %v835
        %v927 = vunpack.c.l.b16 %v836
        %v928 = vunpack.c.h.b16 %v836
        %v929 = vunpack.c.l.b16 %v837
        %v930 = vunpack.c.h.b16 %v837
        %v931 = vunpack.c.l.b16 %v838
        %v932 = vunpack.c.h.b16 %v838
        %v933 = vunpack.c.l.b16 %v839
        %v934 = vunpack.c.h.b16 %v839
        %v935 = vunpack.c.l.b16 %v840
        %v936 = vunpack.c.h.b16 %v840
        %v937 = vpack.c.b16 %v907, %v905
        %v938 = vpack.c.b16 %v908, %v906
        %v939 = vpack.c.b16 %v911, %v909
        %v940 = vpack.c.b16 %v912, %v910
        %v941 = vpack.c.b16 %v915, %v913
        %v942 = vpack.c.b16 %v916, %v914
        %v943 = vpack.c.b16 %v919, %v917
        %v944 = vpack.c.b16 %v920, %v918
        %v945 = vpack.c.b16 %v923, %v921
        %v946 = vpack.c.b16 %v924, %v922
        %v947 = vpack.c.b16 %v927, %v925
        %v948 = vpack.c.b16 %v928, %v926
        %v949 = vpack.c.b16 %v931, %v929
        %v950 = vpack.c.b16 %v932, %v930
        %v951 = vpack.c.b16 %v935, %v933
        %v952 = vpack.c.b16 %v936, %v934
        %969 = vmatprep.subr.bf16.mxu0 %v938
        %970 = vmatpush1.bf16.msra.mxu0 %v937
        %971 = vmatprep.subr.bf16.mxu0 %v940
        %972 = vmatpush1.bf16.msra.mxu0 %v939
        %973 = vmatprep.subr.bf16.mxu0 %v942
        %974 = vmatpush1.bf16.msra.mxu0 %v941
        %975 = vmatprep.subr.bf16.mxu0 %v944
        %976 = vmatpush1.bf16.msra.mxu0 %v943
        %977 = vmatprep.subr.bf16.mxu0 %v946
        %978 = vmatpush1.bf16.msra.mxu0 %v945
        %979 = vmatprep.subr.bf16.mxu0 %v948
        %980 = vmatpush1.bf16.msra.mxu0 %v947
        %981 = vmatprep.subr.bf16.mxu0 %v950
        %982 = vmatpush1.bf16.msra.mxu0 %v949
        %983 = vmatprep.subr.bf16.mxu0 %v952
        %984 = vmatpush1.bf16.msra.mxu0 %v951
        %985 = vmatprep.subr.bf16.mxu0 0
        %986 = vmatpush1.bf16.msra.mxu0 0
        %987 = vmatprep.subr.bf16.mxu0 0
        %988 = vmatpush1.bf16.msra.mxu0 0
        %989 = vmatprep.subr.bf16.mxu0 0
        %990 = vmatpush1.bf16.msra.mxu0 0
        %991 = vmatprep.subr.bf16.mxu0 0
        %992 = vmatpush1.bf16.msra.mxu0 0
        %993 = vmatprep.subr.bf16.mxu0 0
        %994 = vmatpush1.bf16.msra.mxu0 0
        %995 = vmatprep.subr.bf16.mxu0 0
        %996 = vmatpush1.bf16.msra.mxu0 0
        %997 = vmatprep.subr.bf16.mxu0 0
        %998 = vmatpush1.bf16.msra.mxu0 0
        %999 = vmatprep.subr.bf16.mxu0 0
        %1000 = vmatpush1.bf16.msra.mxu0 0
        %1001 = vmatprep.mubr.bf16.mxu0 0
        %1002 = vmatmul.mubr.bf16.gmra.mrb[0].mxu0 %v873
        %v1003 = vpop.f32.mrb[0].mxu0
        %v1004 = vadd.f32 0.0, %v1003
        %v1005 = vpop.f32.mrb[0].mxu0
        %v1006 = vadd.f32 0.0, %v1005
        %v1007 = vpop.f32.mrb[0].mxu0
        %v1008 = vadd.f32 0.0, %v1007
        %v1009 = vpop.f32.mrb[0].mxu0
        %v1010 = vadd.f32 0.0, %v1009
        %1011 = vmatprep.mubr.bf16.mxu0 0
        %1012 = vmatmul.mubr.bf16.gmra.mrb[0].mxu0 %v874
        %v1013 = vpop.f32.mrb[0].mxu0
        %v1014 = vadd.f32 0.0, %v1013
        %v1015 = vpop.f32.mrb[0].mxu0
        %v1016 = vadd.f32 0.0, %v1015
        %v1017 = vpop.f32.mrb[0].mxu0
        %v1018 = vadd.f32 0.0, %v1017
        %v1019 = vpop.f32.mrb[0].mxu0
        %v1020 = vadd.f32 0.0, %v1019
        %1021 = vmatprep.mubr.bf16.mxu0 0
        %1022 = vmatmul.mubr.bf16.gmra.mrb[0].mxu0 %v875
        %v1023 = vpop.f32.mrb[0].mxu0
        %v1024 = vadd.f32 0.0, %v1023
        %v1025 = vpop.f32.mrb[0].mxu0
        %v1026 = vadd.f32 0.0, %v1025
        %v1027 = vpop.f32.mrb[0].mxu0
        %v1028 = vadd.f32 0.0, %v1027
        %v1029 = vpop.f32.mrb[0].mxu0
        %v1030 = vadd.f32 0.0, %v1029
        %1031 = vmatprep.mubr.bf16.mxu0 0
        %1032 = vmatmul.mubr.bf16.gmra.mrb[0].mxu0 %v876
        %v1033 = vpop.f32.mrb[0].mxu0
        %v1034 = vadd.f32 0.0, %v1033
        %v1035 = vpop.f32.mrb[0].mxu0
        %v1036 = vadd.f32 0.0, %v1035
        %v1037 = vpop.f32.mrb[0].mxu0
        %v1038 = vadd.f32 0.0, %v1037
        %v1039 = vpop.f32.mrb[0].mxu0
        %v1040 = vadd.f32 0.0, %v1039
        %1041 = vmatprep.mubr.bf16.mxu0 0
        %1042 = vmatmul.mubr.bf16.gmra.mrb[0].mxu0 %v877
        %v1043 = vpop.f32.mrb[0].mxu0
        %v1044 = vadd.f32 0.0, %v1043
        %v1045 = vpop.f32.mrb[0].mxu0
        %v1046 = vadd.f32 0.0, %v1045
        %v1047 = vpop.f32.mrb[0].mxu0
        %v1048 = vadd.f32 0.0, %v1047
        %v1049 = vpop.f32.mrb[0].mxu0
        %v1050 = vadd.f32 0.0, %v1049
        %1051 = vmatprep.mubr.bf16.mxu0 0
        %1052 = vmatmul.mubr.bf16.gmra.mrb[0].mxu0 %v878
        %v1053 = vpop.f32.mrb[0].mxu0
        %v1054 = vadd.f32 0.0, %v1053
        %v1055 = vpop.f32.mrb[0].mxu0
        %v1056 = vadd.f32 0.0, %v1055
        %v1057 = vpop.f32.mrb[0].mxu0
        %v1058 = vadd.f32 0.0, %v1057
        %v1059 = vpop.f32.mrb[0].mxu0
        %v1060 = vadd.f32 0.0, %v1059
        %1061 = vmatprep.mubr.bf16.mxu0 0
        %1062 = vmatmul.mubr.bf16.gmra.mrb[0].mxu0 %v879
        %v1063 = vpop.f32.mrb[0].mxu0
        %v1064 = vadd.f32 0.0, %v1063
        %v1065 = vpop.f32.mrb[0].mxu0
        %v1066 = vadd.f32 0.0, %v1065
        %v1067 = vpop.f32.mrb[0].mxu0
        %v1068 = vadd.f32 0.0, %v1067
        %v1069 = vpop.f32.mrb[0].mxu0
        %v1070 = vadd.f32 0.0, %v1069
        %1071 = vmatprep.mubr.bf16.mxu0 0
        %1072 = vmatmul.mubr.bf16.gmra.mrb[0].mxu0 %v880
        %v1073 = vpop.f32.mrb[0].mxu0
        %v1074 = vadd.f32 0.0, %v1073
        %v1075 = vpop.f32.mrb[0].mxu0
        %v1076 = vadd.f32 0.0, %v1075
        %v1077 = vpop.f32.mrb[0].mxu0
        %v1078 = vadd.f32 0.0, %v1077
        %v1079 = vpop.f32.mrb[0].mxu0
        %v1080 = vadd.f32 0.0, %v1079
        %1081 = vdwg.mxu0
        %v1082 = vld [vmem:[%s464] sm:$0xf]
        %v1083 = vld [vmem:[%s464 + $0x4] sm:$0xf]
        %v1084 = vld [vmem:[%s464 + $0x8] sm:$0xf]
        %v1085 = vld [vmem:[%s464 + $0xc] sm:$0xf]
        %v1086 = vld [vmem:[%s464 + $0x10] sm:$0xf]
        %v1087 = vld [vmem:[%s464 + $0x14] sm:$0xf]
        %v1088 = vld [vmem:[%s464 + $0x18] sm:$0xf]
        %v1089 = vld [vmem:[%s464 + $0x1c] sm:$0xf]
        %v1090 = vld [vmem:[%s464 + $0x20] sm:$0xf]
        %v1091 = vld [vmem:[%s464 + $0x24] sm:$0xf]
        %v1092 = vld [vmem:[%s464 + $0x28] sm:$0xf]
        %v1093 = vld [vmem:[%s464 + $0x2c] sm:$0xf]
        %v1094 = vld [vmem:[%s464 + $0x30] sm:$0xf]
        %v1095 = vld [vmem:[%s464 + $0x34] sm:$0xf]
        %v1096 = vld [vmem:[%s464 + $0x38] sm:$0xf]
        %v1097 = vld [vmem:[%s464 + $0x3c] sm:$0xf]
        %v1098 = vld [vmem:[#allocation11] sm:$0xff]
        %v1099 = vld [vmem:[#allocation11 + $0x8] sm:$0xff]
        %v1100 = vld [vmem:[#allocation11 + $0x10] sm:$0xff]
        %v1101 = vld [vmem:[#allocation11 + $0x18] sm:$0xff]
        %v1102 = vld [vmem:[#allocation11 + $0x20] sm:$0xff]
        %v1103 = vld [vmem:[#allocation11 + $0x28] sm:$0xff]
        %v1104 = vld [vmem:[#allocation11 + $0x30] sm:$0xff]
        %v1105 = vld [vmem:[#allocation11 + $0x38] sm:$0xff]
        %v1106 = vld [vmem:[#allocation11 + $0x40] sm:$0xff]
        %v1107 = vld [vmem:[#allocation11 + $0x48] sm:$0xff]
        %v1108 = vld [vmem:[#allocation11 + $0x50] sm:$0xff]
        %v1109 = vld [vmem:[#allocation11 + $0x58] sm:$0xff]
        %v1110 = vld [vmem:[#allocation11 + $0x60] sm:$0xff]
        %v1111 = vld [vmem:[#allocation11 + $0x68] sm:$0xff]
        %v1112 = vld [vmem:[#allocation11 + $0x70] sm:$0xff]
        %v1113 = vld [vmem:[#allocation11 + $0x78] sm:$0xff]
        %v1130 = vunpack.c.l.b16 %v1082
        %v1131 = vunpack.c.l.b16 %v1083
        %v1132 = vunpack.c.l.b16 %v1084
        %v1133 = vunpack.c.l.b16 %v1085
        %v1134 = vunpack.c.l.b16 %v1086
        %v1135 = vunpack.c.l.b16 %v1087
        %v1136 = vunpack.c.l.b16 %v1088
        %v1137 = vunpack.c.l.b16 %v1089
        %v1138 = vunpack.c.l.b16 %v1090
        %v1139 = vunpack.c.l.b16 %v1091
        %v1140 = vunpack.c.l.b16 %v1092
        %v1141 = vunpack.c.l.b16 %v1093
        %v1142 = vunpack.c.l.b16 %v1094
        %v1143 = vunpack.c.l.b16 %v1095
        %v1144 = vunpack.c.l.b16 %v1096
        %v1145 = vunpack.c.l.b16 %v1097
        %v1146 = vpack.c.b16 %v1131, %v1130
        %v1147 = vpack.c.b16 %v1133, %v1132
        %v1148 = vpack.c.b16 %v1135, %v1134
        %v1149 = vpack.c.b16 %v1137, %v1136
        %v1150 = vpack.c.b16 %v1139, %v1138
        %v1151 = vpack.c.b16 %v1141, %v1140
        %v1152 = vpack.c.b16 %v1143, %v1142
        %v1153 = vpack.c.b16 %v1145, %v1144
        %v1178 = vunpack.c.l.b16 %v1098
        %v1179 = vunpack.c.h.b16 %v1098
        %v1180 = vunpack.c.l.b16 %v1099
        %v1181 = vunpack.c.h.b16 %v1099
        %v1182 = vunpack.c.l.b16 %v1100
        %v1183 = vunpack.c.h.b16 %v1100
        %v1184 = vunpack.c.l.b16 %v1101
        %v1185 = vunpack.c.h.b16 %v1101
        %v1186 = vunpack.c.l.b16 %v1102
        %v1187 = vunpack.c.h.b16 %v1102
        %v1188 = vunpack.c.l.b16 %v1103
        %v1189 = vunpack.c.h.b16 %v1103
        %v1190 = vunpack.c.l.b16 %v1104
        %v1191 = vunpack.c.h.b16 %v1104
        %v1192 = vunpack.c.l.b16 %v1105
        %v1193 = vunpack.c.h.b16 %v1105
        %v1194 = vunpack.c.l.b16 %v1106
        %v1195 = vunpack.c.h.b16 %v1106
        %v1196 = vunpack.c.l.b16 %v1107
        %v1197 = vunpack.c.h.b16 %v1107
        %v1198 = vunpack.c.l.b16 %v1108
        %v1199 = vunpack.c.h.b16 %v1108
        %v1200 = vunpack.c.l.b16 %v1109
        %v1201 = vunpack.c.h.b16 %v1109
        %v1202 = vunpack.c.l.b16 %v1110
        %v1203 = vunpack.c.h.b16 %v1110
        %v1204 = vunpack.c.l.b16 %v1111
        %v1205 = vunpack.c.h.b16 %v1111
        %v1206 = vunpack.c.l.b16 %v1112
        %v1207 = vunpack.c.h.b16 %v1112
        %v1208 = vunpack.c.l.b16 %v1113
        %v1209 = vunpack.c.h.b16 %v1113
        %v1210 = vpack.c.b16 %v1180, %v1178
        %v1211 = vpack.c.b16 %v1181, %v1179
        %v1212 = vpack.c.b16 %v1184, %v1182
        %v1213 = vpack.c.b16 %v1185, %v1183
        %v1214 = vpack.c.b16 %v1188, %v1186
        %v1215 = vpack.c.b16 %v1189, %v1187
        %v1216 = vpack.c.b16 %v1192, %v1190
        %v1217 = vpack.c.b16 %v1193, %v1191
        %v1218 = vpack.c.b16 %v1196, %v1194
        %v1219 = vpack.c.b16 %v1197, %v1195
        %v1220 = vpack.c.b16 %v1200, %v1198
        %v1221 = vpack.c.b16 %v1201, %v1199
        %v1222 = vpack.c.b16 %v1204, %v1202
        %v1223 = vpack.c.b16 %v1205, %v1203
        %v1224 = vpack.c.b16 %v1208, %v1206
        %v1225 = vpack.c.b16 %v1209, %v1207
        %1242 = vmatprep.subr.bf16.mxu0 %v1211
        %1243 = vmatpush1.bf16.msra.mxu0 %v1210
        %1244 = vmatprep.subr.bf16.mxu0 %v1213
        %1245 = vmatpush1.bf16.msra.mxu0 %v1212
        %1246 = vmatprep.subr.bf16.mxu0 %v1215
        %1247 = vmatpush1.bf16.msra.mxu0 %v1214
        %1248 = vmatprep.subr.bf16.mxu0 %v1217
        %1249 = vmatpush1.bf16.msra.mxu0 %v1216
        %1250 = vmatprep.subr.bf16.mxu0 %v1219
        %1251 = vmatpush1.bf16.msra.mxu0 %v1218
        %1252 = vmatprep.subr.bf16.mxu0 %v1221
        %1253 = vmatpush1.bf16.msra.mxu0 %v1220
        %1254 = vmatprep.subr.bf16.mxu0 %v1223
        %1255 = vmatpush1.bf16.msra.mxu0 %v1222
        %1256 = vmatprep.subr.bf16.mxu0 %v1225
        %1257 = vmatpush1.bf16.msra.mxu0 %v1224
        %1258 = vmatprep.subr.bf16.mxu0 0
        %1259 = vmatpush1.bf16.msra.mxu0 0
        %1260 = vmatprep.subr.bf16.mxu0 0
        %1261 = vmatpush1.bf16.msra.mxu0 0
        %1262 = vmatprep.subr.bf16.mxu0 0
        %1263 = vmatpush1.bf16.msra.mxu0 0
        %1264 = vmatprep.subr.bf16.mxu0 0
        %1265 = vmatpush1.bf16.msra.mxu0 0
        %1266 = vmatprep.subr.bf16.mxu0 0
        %1267 = vmatpush1.bf16.msra.mxu0 0
        %1268 = vmatprep.subr.bf16.mxu0 0
        %1269 = vmatpush1.bf16.msra.mxu0 0
        %1270 = vmatprep.subr.bf16.mxu0 0
        %1271 = vmatpush1.bf16.msra.mxu0 0
        %1272 = vmatprep.subr.bf16.mxu0 0
        %1273 = vmatpush1.bf16.msra.mxu0 0
        %1274 = vmatprep.mubr.bf16.mxu0 0
        %1275 = vmatmul.mubr.bf16.gmra.mrb[0].mxu0 %v1146
        %v1276 = vpop.f32.mrb[0].mxu0
        %v1277 = vadd.f32 0.0, %v1276
        %v1278 = vpop.f32.mrb[0].mxu0
        %v1279 = vadd.f32 0.0, %v1278
        %v1280 = vpop.f32.mrb[0].mxu0
        %v1281 = vadd.f32 0.0, %v1280
        %v1282 = vpop.f32.mrb[0].mxu0
        %v1283 = vadd.f32 0.0, %v1282
        %1284 = vmatprep.mubr.bf16.mxu0 0
        %1285 = vmatmul.mubr.bf16.gmra.mrb[0].mxu0 %v1147
        %v1286 = vpop.f32.mrb[0].mxu0
        %v1287 = vadd.f32 0.0, %v1286
        %v1288 = vpop.f32.mrb[0].mxu0
        %v1289 = vadd.f32 0.0, %v1288
        %v1290 = vpop.f32.mrb[0].mxu0
        %v1291 = vadd.f32 0.0, %v1290
        %v1292 = vpop.f32.mrb[0].mxu0
        %v1293 = vadd.f32 0.0, %v1292
        %1294 = vmatprep.mubr.bf16.mxu0 0
        %1295 = vmatmul.mubr.bf16.gmra.mrb[0].mxu0 %v1148
        %v1296 = vpop.f32.mrb[0].mxu0
        %v1297 = vadd.f32 0.0, %v1296
        %v1298 = vpop.f32.mrb[0].mxu0
        %v1299 = vadd.f32 0.0, %v1298
        %v1300 = vpop.f32.mrb[0].mxu0
        %v1301 = vadd.f32 0.0, %v1300
        %v1302 = vpop.f32.mrb[0].mxu0
        %v1303 = vadd.f32 0.0, %v1302
        %1304 = vmatprep.mubr.bf16.mxu0 0
        %1305 = vmatmul.mubr.bf16.gmra.mrb[0].mxu0 %v1149
        %v1306 = vpop.f32.mrb[0].mxu0
        %v1307 = vadd.f32 0.0, %v1306
        %v1308 = vpop.f32.mrb[0].mxu0
        %v1309 = vadd.f32 0.0, %v1308
        %v1310 = vpop.f32.mrb[0].mxu0
        %v1311 = vadd.f32 0.0, %v1310
        %v1312 = vpop.f32.mrb[0].mxu0
        %v1313 = vadd.f32 0.0, %v1312
        %1314 = vmatprep.mubr.bf16.mxu0 0
        %1315 = vmatmul.mubr.bf16.gmra.mrb[0].mxu0 %v1150
        %v1316 = vpop.f32.mrb[0].mxu0
        %v1317 = vadd.f32 0.0, %v1316
        %v1318 = vpop.f32.mrb[0].mxu0
        %v1319 = vadd.f32 0.0, %v1318
        %v1320 = vpop.f32.mrb[0].mxu0
        %v1321 = vadd.f32 0.0, %v1320
        %v1322 = vpop.f32.mrb[0].mxu0
        %v1323 = vadd.f32 0.0, %v1322
        %1324 = vmatprep.mubr.bf16.mxu0 0
        %1325 = vmatmul.mubr.bf16.gmra.mrb[0].mxu0 %v1151
        %v1326 = vpop.f32.mrb[0].mxu0
        %v1327 = vadd.f32 0.0, %v1326
        %v1328 = vpop.f32.mrb[0].mxu0
        %v1329 = vadd.f32 0.0, %v1328
        %v1330 = vpop.f32.mrb[0].mxu0
        %v1331 = vadd.f32 0.0, %v1330
        %v1332 = vpop.f32.mrb[0].mxu0
        %v1333 = vadd.f32 0.0, %v1332
        %1334 = vmatprep.mubr.bf16.mxu0 0
        %1335 = vmatmul.mubr.bf16.gmra.mrb[0].mxu0 %v1152
        %v1336 = vpop.f32.mrb[0].mxu0
        %v1337 = vadd.f32 0.0, %v1336
        %v1338 = vpop.f32.mrb[0].mxu0
        %v1339 = vadd.f32 0.0, %v1338
        %v1340 = vpop.f32.mrb[0].mxu0
        %v1341 = vadd.f32 0.0, %v1340
        %v1342 = vpop.f32.mrb[0].mxu0
        %v1343 = vadd.f32 0.0, %v1342
        %1344 = vmatprep.mubr.bf16.mxu0 0
        %1345 = vmatmul.mubr.bf16.gmra.mrb[0].mxu0 %v1153
        %v1346 = vpop.f32.mrb[0].mxu0
        %v1347 = vadd.f32 0.0, %v1346
        %v1348 = vpop.f32.mrb[0].mxu0
        %v1349 = vadd.f32 0.0, %v1348
        %v1350 = vpop.f32.mrb[0].mxu0
        %v1351 = vadd.f32 0.0, %v1350
        %v1352 = vpop.f32.mrb[0].mxu0
        %v1353 = vadd.f32 0.0, %v1352
        %1354 = vdwg.mxu0
        %v1355 = vld [vmem:[#allocation14] sm:$0xf]
        %v1356 = vld [vmem:[#allocation14 + $0x4] sm:$0xf]
        %v1357 = vld [vmem:[#allocation14 + $0x8] sm:$0xf]
        %v1358 = vld [vmem:[#allocation14 + $0xc] sm:$0xf]
        %v1359 = vld [vmem:[#allocation14 + $0x10] sm:$0xf]
        %v1360 = vld [vmem:[#allocation14 + $0x14] sm:$0xf]
        %v1361 = vld [vmem:[#allocation14 + $0x18] sm:$0xf]
        %v1362 = vld [vmem:[#allocation14 + $0x1c] sm:$0xf]
        %v1363 = vld [vmem:[#allocation14 + $0x20] sm:$0xf]
        %v1364 = vld [vmem:[#allocation14 + $0x24] sm:$0xf]
        %v1365 = vld [vmem:[#allocation14 + $0x28] sm:$0xf]
        %v1366 = vld [vmem:[#allocation14 + $0x2c] sm:$0xf]
        %v1367 = vld [vmem:[#allocation14 + $0x30] sm:$0xf]
        %v1368 = vld [vmem:[#allocation14 + $0x34] sm:$0xf]
        %v1369 = vld [vmem:[#allocation14 + $0x38] sm:$0xf]
        %v1370 = vld [vmem:[#allocation14 + $0x3c] sm:$0xf]
        %v1371 = vld [vmem:[#allocation16] sm:$0xf]
        %v1372 = vld [vmem:[#allocation16 + $0x4] sm:$0xf]
        %v1373 = vld [vmem:[#allocation16 + $0x8] sm:$0xf]
        %v1374 = vld [vmem:[#allocation16 + $0xc] sm:$0xf]
        %v1375 = vld [vmem:[#allocation16 + $0x10] sm:$0xf]
        %v1376 = vld [vmem:[#allocation16 + $0x14] sm:$0xf]
        %v1377 = vld [vmem:[#allocation16 + $0x18] sm:$0xf]
        %v1378 = vld [vmem:[#allocation16 + $0x1c] sm:$0xf]
        %v1379 = vld [vmem:[#allocation16 + $0x20] sm:$0xf]
        %v1380 = vld [vmem:[#allocation16 + $0x24] sm:$0xf]
        %v1381 = vld [vmem:[#allocation16 + $0x28] sm:$0xf]
        %v1382 = vld [vmem:[#allocation16 + $0x2c] sm:$0xf]
        %v1383 = vld [vmem:[#allocation16 + $0x30] sm:$0xf]
        %v1384 = vld [vmem:[#allocation16 + $0x34] sm:$0xf]
        %v1385 = vld [vmem:[#allocation16 + $0x38] sm:$0xf]
        %v1386 = vld [vmem:[#allocation16 + $0x3c] sm:$0xf]
        %s1387 = smul.u32 %s37, 128
        %s1388 = sshra.s32 %s1387, 3
        %s1389 = sand.u32 %s1387, 7
        %s1390 = smul.addr %s1388, 4
        %s1391 = scalar_lea.vmem [#allocation14], %s1390
        %v1392 = vld [vmem:[%s1391] sm:$0xf]
        %v1393 = vld [vmem:[%s1391 + $0x4] sm:$0xf]
        %v1394 = vld [vmem:[%s1391 + $0x8] sm:$0xf]
        %v1395 = vld [vmem:[%s1391 + $0xc] sm:$0xf]
        %v1396 = vld [vmem:[%s1391 + $0x10] sm:$0xf]
        %v1397 = vld [vmem:[%s1391 + $0x14] sm:$0xf]
        %v1398 = vld [vmem:[%s1391 + $0x18] sm:$0xf]
        %v1399 = vld [vmem:[%s1391 + $0x1c] sm:$0xf]
        %v1400 = vld [vmem:[%s1391 + $0x20] sm:$0xf]
        %v1401 = vld [vmem:[%s1391 + $0x24] sm:$0xf]
        %v1402 = vld [vmem:[%s1391 + $0x28] sm:$0xf]
        %v1403 = vld [vmem:[%s1391 + $0x2c] sm:$0xf]
        %v1404 = vld [vmem:[%s1391 + $0x30] sm:$0xf]
        %v1405 = vld [vmem:[%s1391 + $0x34] sm:$0xf]
        %v1406 = vld [vmem:[%s1391 + $0x38] sm:$0xf]
        %v1407 = vld [vmem:[%s1391 + $0x3c] sm:$0xf]
        %s1408 = smul.addr %s1388, 4
        %s1409 = scalar_lea.vmem [#allocation16], %s1408
        %v1410 = vld [vmem:[%s1409] sm:$0xf]
        %v1411 = vld [vmem:[%s1409 + $0x4] sm:$0xf]
        %v1412 = vld [vmem:[%s1409 + $0x8] sm:$0xf]
        %v1413 = vld [vmem:[%s1409 + $0xc] sm:$0xf]
        %v1414 = vld [vmem:[%s1409 + $0x10] sm:$0xf]
        %v1415 = vld [vmem:[%s1409 + $0x14] sm:$0xf]
        %v1416 = vld [vmem:[%s1409 + $0x18] sm:$0xf]
        %v1417 = vld [vmem:[%s1409 + $0x1c] sm:$0xf]
        %v1418 = vld [vmem:[%s1409 + $0x20] sm:$0xf]
        %v1419 = vld [vmem:[%s1409 + $0x24] sm:$0xf]
        %v1420 = vld [vmem:[%s1409 + $0x28] sm:$0xf]
        %v1421 = vld [vmem:[%s1409 + $0x2c] sm:$0xf]
        %v1422 = vld [vmem:[%s1409 + $0x30] sm:$0xf]
        %v1423 = vld [vmem:[%s1409 + $0x34] sm:$0xf]
        %v1424 = vld [vmem:[%s1409 + $0x38] sm:$0xf]
        %v1425 = vld [vmem:[%s1409 + $0x3c] sm:$0xf]
        %v1426 = vunpack.c.l.bf16 %v1392
        %v1427 = vunpack.c.l.bf16 %v1393
        %v1428 = vunpack.c.l.bf16 %v1394
        %v1429 = vunpack.c.l.bf16 %v1395
        %v1430 = vunpack.c.l.bf16 %v1396
        %v1431 = vunpack.c.l.bf16 %v1397
        %v1432 = vunpack.c.l.bf16 %v1398
        %v1433 = vunpack.c.l.bf16 %v1399
        %v1434 = vunpack.c.l.bf16 %v1400
        %v1435 = vunpack.c.l.bf16 %v1401
        %v1436 = vunpack.c.l.bf16 %v1402
        %v1437 = vunpack.c.l.bf16 %v1403
        %v1438 = vunpack.c.l.bf16 %v1404
        %v1439 = vunpack.c.l.bf16 %v1405
        %v1440 = vunpack.c.l.bf16 %v1406
        %v1441 = vunpack.c.l.bf16 %v1407
        %v1442 = vmul.f32 %v731, %v1426
        %v1443 = vmul.f32 %v735, %v1427
        %v1444 = vmul.f32 %v741, %v1428
        %v1445 = vmul.f32 %v745, %v1429
        %v1446 = vmul.f32 %v751, %v1430
        %v1447 = vmul.f32 %v755, %v1431
        %v1448 = vmul.f32 %v761, %v1432
        %v1449 = vmul.f32 %v765, %v1433
        %v1450 = vmul.f32 %v771, %v1434
        %v1451 = vmul.f32 %v775, %v1435
        %v1452 = vmul.f32 %v781, %v1436
        %v1453 = vmul.f32 %v785, %v1437
        %v1454 = vmul.f32 %v791, %v1438
        %v1455 = vmul.f32 %v795, %v1439
        %v1456 = vmul.f32 %v801, %v1440
        %v1457 = vmul.f32 %v805, %v1441
        %1458 = vrot.lane.b32.xlu0 %v731, 64
        %v1459 = vpop.permute.xlu0 %1458
        %1460 = vrot.lane.b32.xlu0 %v735, 64
        %v1461 = vpop.permute.xlu0 %1460
        %1462 = vrot.lane.b32.xlu0 %v741, 64
        %v1463 = vpop.permute.xlu0 %1462
        %1464 = vrot.lane.b32.xlu0 %v745, 64
        %v1465 = vpop.permute.xlu0 %1464
        %1466 = vrot.lane.b32.xlu0 %v751, 64
        %v1467 = vpop.permute.xlu0 %1466
        %1468 = vrot.lane.b32.xlu0 %v755, 64
        %v1469 = vpop.permute.xlu0 %1468
        %1470 = vrot.lane.b32.xlu0 %v761, 64
        %v1471 = vpop.permute.xlu0 %1470
        %1472 = vrot.lane.b32.xlu0 %v765, 64
        %v1473 = vpop.permute.xlu0 %1472
        %1474 = vrot.lane.b32.xlu0 %v771, 64
        %v1475 = vpop.permute.xlu0 %1474
        %1476 = vrot.lane.b32.xlu0 %v775, 64
        %v1477 = vpop.permute.xlu0 %1476
        %1478 = vrot.lane.b32.xlu0 %v781, 64
        %v1479 = vpop.permute.xlu0 %1478
        %1480 = vrot.lane.b32.xlu0 %v785, 64
        %v1481 = vpop.permute.xlu0 %1480
        %1482 = vrot.lane.b32.xlu0 %v791, 64
        %v1483 = vpop.permute.xlu0 %1482
        %1484 = vrot.lane.b32.xlu0 %v795, 64
        %v1485 = vpop.permute.xlu0 %1484
        %1486 = vrot.lane.b32.xlu0 %v801, 64
        %v1487 = vpop.permute.xlu0 %1486
        %1488 = vrot.lane.b32.xlu0 %v805, 64
        %v1489 = vpop.permute.xlu0 %1488
        %v1490 = vunpack.c.l.bf16 %v1410
        %v1491 = vunpack.c.l.bf16 %v1411
        %v1492 = vunpack.c.l.bf16 %v1412
        %v1493 = vunpack.c.l.bf16 %v1413
        %v1494 = vunpack.c.l.bf16 %v1414
        %v1495 = vunpack.c.l.bf16 %v1415
        %v1496 = vunpack.c.l.bf16 %v1416
        %v1497 = vunpack.c.l.bf16 %v1417
        %v1498 = vunpack.c.l.bf16 %v1418
        %v1499 = vunpack.c.l.bf16 %v1419
        %v1500 = vunpack.c.l.bf16 %v1420
        %v1501 = vunpack.c.l.bf16 %v1421
        %v1502 = vunpack.c.l.bf16 %v1422
        %v1503 = vunpack.c.l.bf16 %v1423
        %v1504 = vunpack.c.l.bf16 %v1424
        %v1505 = vunpack.c.l.bf16 %v1425
        %v1506 = vmul.f32 %v1459, %v1490
        %v1507 = vmul.f32 %v1461, %v1491
        %v1508 = vmul.f32 %v1463, %v1492
        %v1509 = vmul.f32 %v1465, %v1493
        %v1510 = vmul.f32 %v1467, %v1494
        %v1511 = vmul.f32 %v1469, %v1495
        %v1512 = vmul.f32 %v1471, %v1496
        %v1513 = vmul.f32 %v1473, %v1497
        %v1514 = vmul.f32 %v1475, %v1498
        %v1515 = vmul.f32 %v1477, %v1499
        %v1516 = vmul.f32 %v1479, %v1500
        %v1517 = vmul.f32 %v1481, %v1501
        %v1518 = vmul.f32 %v1483, %v1502
        %v1519 = vmul.f32 %v1485, %v1503
        %v1520 = vmul.f32 %v1487, %v1504
        %v1521 = vmul.f32 %v1489, %v1505
        %v1522 = vadd.f32 %v1442, %v1506
        %v1523 = vadd.f32 %v1443, %v1507
        %v1524 = vadd.f32 %v1444, %v1508
        %v1525 = vadd.f32 %v1445, %v1509
        %v1526 = vadd.f32 %v1446, %v1510
        %v1527 = vadd.f32 %v1447, %v1511
        %v1528 = vadd.f32 %v1448, %v1512
        %v1529 = vadd.f32 %v1449, %v1513
        %v1530 = vadd.f32 %v1450, %v1514
        %v1531 = vadd.f32 %v1451, %v1515
        %v1532 = vadd.f32 %v1452, %v1516
        %v1533 = vadd.f32 %v1453, %v1517
        %v1534 = vadd.f32 %v1454, %v1518
        %v1535 = vadd.f32 %v1455, %v1519
        %v1536 = vadd.f32 %v1456, %v1520
        %v1537 = vadd.f32 %v1457, %v1521
        %v1538 = vunpack.c.l.bf16 %v1355
        %v1539 = vunpack.c.l.bf16 %v1356
        %v1540 = vunpack.c.l.bf16 %v1357
        %v1541 = vunpack.c.l.bf16 %v1358
        %v1542 = vunpack.c.l.bf16 %v1359
        %v1543 = vunpack.c.l.bf16 %v1360
        %v1544 = vunpack.c.l.bf16 %v1361
        %v1545 = vunpack.c.l.bf16 %v1362
        %v1546 = vunpack.c.l.bf16 %v1363
        %v1547 = vunpack.c.l.bf16 %v1364
        %v1548 = vunpack.c.l.bf16 %v1365
        %v1549 = vunpack.c.l.bf16 %v1366
        %v1550 = vunpack.c.l.bf16 %v1367
        %v1551 = vunpack.c.l.bf16 %v1368
        %v1552 = vunpack.c.l.bf16 %v1369
        %v1553 = vunpack.c.l.bf16 %v1370
        %v1554 = vmul.f32 %v1004, %v1538
        %v1555 = vmul.f32 %v1008, %v1539
        %v1556 = vmul.f32 %v1014, %v1540
        %v1557 = vmul.f32 %v1018, %v1541
        %v1558 = vmul.f32 %v1024, %v1542
        %v1559 = vmul.f32 %v1028, %v1543
        %v1560 = vmul.f32 %v1034, %v1544
        %v1561 = vmul.f32 %v1038, %v1545
        %v1562 = vmul.f32 %v1044, %v1546
        %v1563 = vmul.f32 %v1048, %v1547
        %v1564 = vmul.f32 %v1054, %v1548
        %v1565 = vmul.f32 %v1058, %v1549
        %v1566 = vmul.f32 %v1064, %v1550
        %v1567 = vmul.f32 %v1068, %v1551
        %v1568 = vmul.f32 %v1074, %v1552
        %v1569 = vmul.f32 %v1078, %v1553
        %1570 = vrot.lane.b32.xlu0 %v1004, 64
        %v1571 = vpop.permute.xlu0 %1570
        %1572 = vrot.lane.b32.xlu0 %v1008, 64
        %v1573 = vpop.permute.xlu0 %1572
        %1574 = vrot.lane.b32.xlu0 %v1014, 64
        %v1575 = vpop.permute.xlu0 %1574
        %1576 = vrot.lane.b32.xlu0 %v1018, 64
        %v1577 = vpop.permute.xlu0 %1576
        %1578 = vrot.lane.b32.xlu0 %v1024, 64
        %v1579 = vpop.permute.xlu0 %1578
        %1580 = vrot.lane.b32.xlu0 %v1028, 64
        %v1581 = vpop.permute.xlu0 %1580
        %1582 = vrot.lane.b32.xlu0 %v1034, 64
        %v1583 = vpop.permute.xlu0 %1582
        %1584 = vrot.lane.b32.xlu0 %v1038, 64
        %v1585 = vpop.permute.xlu0 %1584
        %1586 = vrot.lane.b32.xlu0 %v1044, 64
        %v1587 = vpop.permute.xlu0 %1586
        %1588 = vrot.lane.b32.xlu0 %v1048, 64
        %v1589 = vpop.permute.xlu0 %1588
        %1590 = vrot.lane.b32.xlu0 %v1054, 64
        %v1591 = vpop.permute.xlu0 %1590
        %1592 = vrot.lane.b32.xlu0 %v1058, 64
        %v1593 = vpop.permute.xlu0 %1592
        %1594 = vrot.lane.b32.xlu0 %v1064, 64
        %v1595 = vpop.permute.xlu0 %1594
        %1596 = vrot.lane.b32.xlu0 %v1068, 64
        %v1597 = vpop.permute.xlu0 %1596
        %1598 = vrot.lane.b32.xlu0 %v1074, 64
        %v1599 = vpop.permute.xlu0 %1598
        %1600 = vrot.lane.b32.xlu0 %v1078, 64
        %v1601 = vpop.permute.xlu0 %1600
        %v1602 = vunpack.c.l.bf16 %v1371
        %v1603 = vunpack.c.l.bf16 %v1372
        %v1604 = vunpack.c.l.bf16 %v1373
        %v1605 = vunpack.c.l.bf16 %v1374
        %v1606 = vunpack.c.l.bf16 %v1375
        %v1607 = vunpack.c.l.bf16 %v1376
        %v1608 = vunpack.c.l.bf16 %v1377
        %v1609 = vunpack.c.l.bf16 %v1378
        %v1610 = vunpack.c.l.bf16 %v1379
        %v1611 = vunpack.c.l.bf16 %v1380
        %v1612 = vunpack.c.l.bf16 %v1381
        %v1613 = vunpack.c.l.bf16 %v1382
        %v1614 = vunpack.c.l.bf16 %v1383
        %v1615 = vunpack.c.l.bf16 %v1384
        %v1616 = vunpack.c.l.bf16 %v1385
        %v1617 = vunpack.c.l.bf16 %v1386
        %v1618 = vmul.f32 %v1571, %v1602
        %v1619 = vmul.f32 %v1573, %v1603
        %v1620 = vmul.f32 %v1575, %v1604
        %v1621 = vmul.f32 %v1577, %v1605
        %v1622 = vmul.f32 %v1579, %v1606
        %v1623 = vmul.f32 %v1581, %v1607
        %v1624 = vmul.f32 %v1583, %v1608
        %v1625 = vmul.f32 %v1585, %v1609
        %v1626 = vmul.f32 %v1587, %v1610
        %v1627 = vmul.f32 %v1589, %v1611
        %v1628 = vmul.f32 %v1591, %v1612
        %v1629 = vmul.f32 %v1593, %v1613
        %v1630 = vmul.f32 %v1595, %v1614
        %v1631 = vmul.f32 %v1597, %v1615
        %v1632 = vmul.f32 %v1599, %v1616
        %v1633 = vmul.f32 %v1601, %v1617
        %v1634 = vadd.f32 %v1554, %v1618
        %v1635 = vadd.f32 %v1555, %v1619
        %v1636 = vadd.f32 %v1556, %v1620
        %v1637 = vadd.f32 %v1557, %v1621
        %v1638 = vadd.f32 %v1558, %v1622
        %v1639 = vadd.f32 %v1559, %v1623
        %v1640 = vadd.f32 %v1560, %v1624
        %v1641 = vadd.f32 %v1561, %v1625
        %v1642 = vadd.f32 %v1562, %v1626
        %v1643 = vadd.f32 %v1563, %v1627
        %v1644 = vadd.f32 %v1564, %v1628
        %v1645 = vadd.f32 %v1565, %v1629
        %v1646 = vadd.f32 %v1566, %v1630
        %v1647 = vadd.f32 %v1567, %v1631
        %v1648 = vadd.f32 %v1568, %v1632
        %v1649 = vadd.f32 %v1569, %v1633
        %v1650 = vpack.c.bf16 %v1523, %v1522
        %v1651 = vpack.c.bf16 %v1525, %v1524
        %v1652 = vpack.c.bf16 %v1527, %v1526
        %v1653 = vpack.c.bf16 %v1529, %v1528
        %v1654 = vpack.c.bf16 %v1531, %v1530
        %v1655 = vpack.c.bf16 %v1533, %v1532
        %v1656 = vpack.c.bf16 %v1535, %v1534
        %v1657 = vpack.c.bf16 %v1537, %v1536
        %v1658 = vpack.c.bf16 %v1635, %v1634
        %v1659 = vpack.c.bf16 %v1637, %v1636
        %v1660 = vpack.c.bf16 %v1639, %v1638
        %v1661 = vpack.c.bf16 %v1641, %v1640
        %v1662 = vpack.c.bf16 %v1643, %v1642
        %v1663 = vpack.c.bf16 %v1645, %v1644
        %v1664 = vpack.c.bf16 %v1647, %v1646
        %v1665 = vpack.c.bf16 %v1649, %v1648
        %1666 = vmatprep.subr.bf16.mxu0 0
        %1667 = vmatpush1.bf16.xpose.msra.mxu0 %v1658
        %1668 = vmatprep.subr.bf16.mxu0 0
        %1669 = vmatpush1.bf16.xpose.msra.mxu0 %v1659
        %1670 = vmatprep.subr.bf16.mxu0 0
        %1671 = vmatpush1.bf16.xpose.msra.mxu0 %v1660
        %1672 = vmatprep.subr.bf16.mxu0 0
        %1673 = vmatpush1.bf16.xpose.msra.mxu0 %v1661
        %1674 = vmatprep.subr.bf16.mxu0 0
        %1675 = vmatpush1.bf16.xpose.msra.mxu0 %v1662
        %1676 = vmatprep.subr.bf16.mxu0 0
        %1677 = vmatpush1.bf16.xpose.msra.mxu0 %v1663
        %1678 = vmatprep.subr.bf16.mxu0 0
        %1679 = vmatpush1.bf16.xpose.msra.mxu0 %v1664
        %1680 = vmatprep.subr.bf16.mxu0 0
        %1681 = vmatpush1.bf16.xpose.msra.mxu0 %v1665
        %1682 = vmatprep.subr.bf16.mxu0 0
        %1683 = vmatpush1.bf16.xpose.msra.mxu0 0
        %1684 = vmatprep.subr.bf16.mxu0 0
        %1685 = vmatpush1.bf16.xpose.msra.mxu0 0
        %1686 = vmatprep.subr.bf16.mxu0 0
        %1687 = vmatpush1.bf16.xpose.msra.mxu0 0
        %1688 = vmatprep.subr.bf16.mxu0 0
        %1689 = vmatpush1.bf16.xpose.msra.mxu0 0
        %1690 = vmatprep.subr.bf16.mxu0 0
        %1691 = vmatpush1.bf16.xpose.msra.mxu0 0
        %1692 = vmatprep.subr.bf16.mxu0 0
        %1693 = vmatpush1.bf16.xpose.msra.mxu0 0
        %1694 = vmatprep.subr.bf16.mxu0 0
        %1695 = vmatpush1.bf16.xpose.msra.mxu0 0
        %1696 = vmatprep.subr.bf16.mxu0 0
        %1697 = vmatpush1.bf16.xpose.msra.mxu0 0
        %1698 = vmatprep.mubr.bf16.mxu0 0
        %1699 = vmatmul.mubr.bf16.gmra.mrb[0].mxu0 %v1650
        %v1700 = vpop.f32.mrb[0].mxu0
        %v1701 = vadd.f32 0.0, %v1700
        %v1702 = vpop.f32.mrb[0].mxu0
        %v1703 = vpop.f32.mrb[0].mxu0
        %v1704 = vadd.f32 0.0, %v1703
        %v1705 = vpop.f32.mrb[0].mxu0
        %1706 = vmatprep.mubr.bf16.mxu0 0
        %1707 = vmatmul.mubr.bf16.gmra.mrb[0].mxu0 %v1651
        %v1708 = vpop.f32.mrb[0].mxu0
        %v1709 = vadd.f32 0.0, %v1708
        %v1710 = vpop.f32.mrb[0].mxu0
        %v1711 = vpop.f32.mrb[0].mxu0
        %v1712 = vadd.f32 0.0, %v1711
        %v1713 = vpop.f32.mrb[0].mxu0
        %1714 = vmatprep.mubr.bf16.mxu0 0
        %1715 = vmatmul.mubr.bf16.gmra.mrb[0].mxu0 %v1652
        %v1716 = vpop.f32.mrb[0].mxu0
        %v1717 = vadd.f32 0.0, %v1716
        %v1718 = vpop.f32.mrb[0].mxu0
        %v1719 = vpop.f32.mrb[0].mxu0
        %v1720 = vadd.f32 0.0, %v1719
        %v1721 = vpop.f32.mrb[0].mxu0
        %1722 = vmatprep.mubr.bf16.mxu0 0
        %1723 = vmatmul.mubr.bf16.gmra.mrb[0].mxu0 %v1653
        %v1724 = vpop.f32.mrb[0].mxu0
        %v1725 = vadd.f32 0.0, %v1724
        %v1726 = vpop.f32.mrb[0].mxu0
        %v1727 = vpop.f32.mrb[0].mxu0
        %v1728 = vadd.f32 0.0, %v1727
        %v1729 = vpop.f32.mrb[0].mxu0
        %1730 = vmatprep.mubr.bf16.mxu0 0
        %1731 = vmatmul.mubr.bf16.gmra.mrb[0].mxu0 %v1654
        %v1732 = vpop.f32.mrb[0].mxu0
        %v1733 = vadd.f32 0.0, %v1732
        %v1734 = vpop.f32.mrb[0].mxu0
        %v1735 = vpop.f32.mrb[0].mxu0
        %v1736 = vadd.f32 0.0, %v1735
        %v1737 = vpop.f32.mrb[0].mxu0
        %1738 = vmatprep.mubr.bf16.mxu0 0
        %1739 = vmatmul.mubr.bf16.gmra.mrb[0].mxu0 %v1655
        %v1740 = vpop.f32.mrb[0].mxu0
        %v1741 = vadd.f32 0.0, %v1740
        %v1742 = vpop.f32.mrb[0].mxu0
        %v1743 = vpop.f32.mrb[0].mxu0
        %v1744 = vadd.f32 0.0, %v1743
        %v1745 = vpop.f32.mrb[0].mxu0
        %1746 = vmatprep.mubr.bf16.mxu0 0
        %1747 = vmatmul.mubr.bf16.gmra.mrb[0].mxu0 %v1656
        %v1748 = vpop.f32.mrb[0].mxu0
        %v1749 = vadd.f32 0.0, %v1748
        %v1750 = vpop.f32.mrb[0].mxu0
        %v1751 = vpop.f32.mrb[0].mxu0
        %v1752 = vadd.f32 0.0, %v1751
        %v1753 = vpop.f32.mrb[0].mxu0
        %1754 = vmatprep.mubr.bf16.mxu0 0
        %1755 = vmatmul.mubr.bf16.gmra.mrb[0].mxu0 %v1657
        %v1756 = vpop.f32.mrb[0].mxu0
        %v1757 = vadd.f32 0.0, %v1756
        %v1758 = vpop.f32.mrb[0].mxu0
        %v1759 = vpop.f32.mrb[0].mxu0
        %v1760 = vadd.f32 0.0, %v1759
        %v1761 = vpop.f32.mrb[0].mxu0
        %1762 = vdwg.mxu0
        %1763 = vmax.xlane.f32.xlu0 %v1701
        %v1764 = vpop.xlane.xlu0 %1763
        %1765 = vmax.xlane.f32.xlu0 %v1704
        %v1766 = vpop.xlane.xlu0 %1765
        %1767 = vmax.xlane.f32.xlu0 %v1709
        %v1768 = vpop.xlane.xlu0 %1767
        %1769 = vmax.xlane.f32.xlu0 %v1712
        %v1770 = vpop.xlane.xlu0 %1769
        %1771 = vmax.xlane.f32.xlu0 %v1717
        %v1772 = vpop.xlane.xlu0 %1771
        %1773 = vmax.xlane.f32.xlu0 %v1720
        %v1774 = vpop.xlane.xlu0 %1773
        %1775 = vmax.xlane.f32.xlu0 %v1725
        %v1776 = vpop.xlane.xlu0 %1775
        %1777 = vmax.xlane.f32.xlu0 %v1728
        %v1778 = vpop.xlane.xlu0 %1777
        %1779 = vmax.xlane.f32.xlu0 %v1733
        %v1780 = vpop.xlane.xlu0 %1779
        %1781 = vmax.xlane.f32.xlu0 %v1736
        %v1782 = vpop.xlane.xlu0 %1781
        %1783 = vmax.xlane.f32.xlu0 %v1741
        %v1784 = vpop.xlane.xlu0 %1783
        %1785 = vmax.xlane.f32.xlu0 %v1744
        %v1786 = vpop.xlane.xlu0 %1785
        %1787 = vmax.xlane.f32.xlu0 %v1749
        %v1788 = vpop.xlane.xlu0 %1787
        %1789 = vmax.xlane.f32.xlu0 %v1752
        %v1790 = vpop.xlane.xlu0 %1789
        %1791 = vmax.xlane.f32.xlu0 %v1757
        %v1792 = vpop.xlane.xlu0 %1791
        %1793 = vmax.xlane.f32.xlu0 %v1760
        %v1794 = vpop.xlane.xlu0 %1793
        %v1795 = vsub.f32 %v1701, %v1764
        %v1796 = vsub.f32 %v1704, %v1766
        %v1797 = vsub.f32 %v1709, %v1768
        %v1798 = vsub.f32 %v1712, %v1770
        %v1799 = vsub.f32 %v1717, %v1772
        %v1800 = vsub.f32 %v1720, %v1774
        %v1801 = vsub.f32 %v1725, %v1776
        %v1802 = vsub.f32 %v1728, %v1778
        %v1803 = vsub.f32 %v1733, %v1780
        %v1804 = vsub.f32 %v1736, %v1782
        %v1805 = vsub.f32 %v1741, %v1784
        %v1806 = vsub.f32 %v1744, %v1786
        %v1807 = vsub.f32 %v1749, %v1788
        %v1808 = vsub.f32 %v1752, %v1790
        %v1809 = vsub.f32 %v1757, %v1792
        %v1810 = vsub.f32 %v1760, %v1794
        %v1811 = vmul.f32 %v1795, 1.442695
        %v1812 = vpow.pop %v1811
        %v1813 = vmul.f32 %v1796, 1.442695
        %v1814 = vpow.pop %v1813
        %v1815 = vmul.f32 %v1797, 1.442695
        %v1816 = vpow.pop %v1815
        %v1817 = vmul.f32 %v1798, 1.442695
        %v1818 = vpow.pop %v1817
        %v1819 = vmul.f32 %v1799, 1.442695
        %v1820 = vpow.pop %v1819
        %v1821 = vmul.f32 %v1800, 1.442695
        %v1822 = vpow.pop %v1821
        %v1823 = vmul.f32 %v1801, 1.442695
        %v1824 = vpow.pop %v1823
        %v1825 = vmul.f32 %v1802, 1.442695
        %v1826 = vpow.pop %v1825
        %v1827 = vmul.f32 %v1803, 1.442695
        %v1828 = vpow.pop %v1827
        %v1829 = vmul.f32 %v1804, 1.442695
        %v1830 = vpow.pop %v1829
        %v1831 = vmul.f32 %v1805, 1.442695
        %v1832 = vpow.pop %v1831
        %v1833 = vmul.f32 %v1806, 1.442695
        %v1834 = vpow.pop %v1833
        %v1835 = vmul.f32 %v1807, 1.442695
        %v1836 = vpow.pop %v1835
        %v1837 = vmul.f32 %v1808, 1.442695
        %v1838 = vpow.pop %v1837
        %v1839 = vmul.f32 %v1809, 1.442695
        %v1840 = vpow.pop %v1839
        %v1841 = vmul.f32 %v1810, 1.442695
        %v1842 = vpow.pop %v1841
        %1843 = vadd.xlane.f32.xlu0 %v1812
        %v1844 = vpop.xlane.xlu0 %1843
        %1845 = vadd.xlane.f32.xlu0 %v1814
        %v1846 = vpop.xlane.xlu0 %1845
        %1847 = vadd.xlane.f32.xlu0 %v1816
        %v1848 = vpop.xlane.xlu0 %1847
        %1849 = vadd.xlane.f32.xlu0 %v1818
        %v1850 = vpop.xlane.xlu0 %1849
        %1851 = vadd.xlane.f32.xlu0 %v1820
        %v1852 = vpop.xlane.xlu0 %1851
        %1853 = vadd.xlane.f32.xlu0 %v1822
        %v1854 = vpop.xlane.xlu0 %1853
        %1855 = vadd.xlane.f32.xlu0 %v1824
        %v1856 = vpop.xlane.xlu0 %1855
        %1857 = vadd.xlane.f32.xlu0 %v1826
        %v1858 = vpop.xlane.xlu0 %1857
        %1859 = vadd.xlane.f32.xlu0 %v1828
        %v1860 = vpop.xlane.xlu0 %1859
        %1861 = vadd.xlane.f32.xlu0 %v1830
        %v1862 = vpop.xlane.xlu0 %1861
        %1863 = vadd.xlane.f32.xlu0 %v1832
        %v1864 = vpop.xlane.xlu0 %1863
        %1865 = vadd.xlane.f32.xlu0 %v1834
        %v1866 = vpop.xlane.xlu0 %1865
        %1867 = vadd.xlane.f32.xlu0 %v1836
        %v1868 = vpop.xlane.xlu0 %1867
        %1869 = vadd.xlane.f32.xlu0 %v1838
        %v1870 = vpop.xlane.xlu0 %1869
        %1871 = vadd.xlane.f32.xlu0 %v1840
        %v1872 = vpop.xlane.xlu0 %1871
        %1873 = vadd.xlane.f32.xlu0 %v1842
        %v1874 = vpop.xlane.xlu0 %1873
        %v1875 = vpack.c.bf16 %v1814, %v1812
        %v1876 = vpack.c.bf16 %v1818, %v1816
        %v1877 = vpack.c.bf16 %v1822, %v1820
        %v1878 = vpack.c.bf16 %v1826, %v1824
        %v1879 = vpack.c.bf16 %v1830, %v1828
        %v1880 = vpack.c.bf16 %v1834, %v1832
        %v1881 = vpack.c.bf16 %v1838, %v1836
        %v1882 = vpack.c.bf16 %v1842, %v1840
        %v1883 = vpack.c.bf16 %v1281, %v1277
        %v1884 = vpack.c.bf16 %v1291, %v1287
        %v1885 = vpack.c.bf16 %v1301, %v1297
        %v1886 = vpack.c.bf16 %v1311, %v1307
        %v1887 = vpack.c.bf16 %v1321, %v1317
        %v1888 = vpack.c.bf16 %v1331, %v1327
        %v1889 = vpack.c.bf16 %v1341, %v1337
        %v1890 = vpack.c.bf16 %v1351, %v1347
        %1891 = vmatprep.subr.bf16.mxu0 0
        %1892 = vmatpush1.bf16.msra.mxu0 %v1883
        %1893 = vmatprep.subr.bf16.mxu0 0
        %1894 = vmatpush1.bf16.msra.mxu0 %v1884
        %1895 = vmatprep.subr.bf16.mxu0 0
        %1896 = vmatpush1.bf16.msra.mxu0 %v1885
        %1897 = vmatprep.subr.bf16.mxu0 0
        %1898 = vmatpush1.bf16.msra.mxu0 %v1886
        %1899 = vmatprep.subr.bf16.mxu0 0
        %1900 = vmatpush1.bf16.msra.mxu0 %v1887
        %1901 = vmatprep.subr.bf16.mxu0 0
        %1902 = vmatpush1.bf16.msra.mxu0 %v1888
        %1903 = vmatprep.subr.bf16.mxu0 0
        %1904 = vmatpush1.bf16.msra.mxu0 %v1889
        %1905 = vmatprep.subr.bf16.mxu0 0
        %1906 = vmatpush1.bf16.msra.mxu0 %v1890
        %1907 = vmatprep.subr.bf16.mxu0 0
        %1908 = vmatpush1.bf16.msra.mxu0 0
        %1909 = vmatprep.subr.bf16.mxu0 0
        %1910 = vmatpush1.bf16.msra.mxu0 0
        %1911 = vmatprep.subr.bf16.mxu0 0
        %1912 = vmatpush1.bf16.msra.mxu0 0
        %1913 = vmatprep.subr.bf16.mxu0 0
        %1914 = vmatpush1.bf16.msra.mxu0 0
        %1915 = vmatprep.subr.bf16.mxu0 0
        %1916 = vmatpush1.bf16.msra.mxu0 0
        %1917 = vmatprep.subr.bf16.mxu0 0
        %1918 = vmatpush1.bf16.msra.mxu0 0
        %1919 = vmatprep.subr.bf16.mxu0 0
        %1920 = vmatpush1.bf16.msra.mxu0 0
        %1921 = vmatprep.subr.bf16.mxu0 0
        %1922 = vmatpush1.bf16.msra.mxu0 0
        %1923 = vmatprep.mubr.bf16.mxu0 0
        %1924 = vmatmul.mubr.bf16.gmra.mrb[0].mxu0 %v1875
        %v1925 = vpop.f32.mrb[0].mxu0
        %v1926 = vadd.f32 0.0, %v1925
        %v1927 = vpop.f32.mrb[0].mxu0
        %v1928 = vpop.f32.mrb[0].mxu0
        %v1929 = vadd.f32 0.0, %v1928
        %v1930 = vpop.f32.mrb[0].mxu0
        %1931 = vmatprep.mubr.bf16.mxu0 0
        %1932 = vmatmul.mubr.bf16.gmra.mrb[0].mxu0 %v1876
        %v1933 = vpop.f32.mrb[0].mxu0
        %v1934 = vadd.f32 0.0, %v1933
        %v1935 = vpop.f32.mrb[0].mxu0
        %v1936 = vpop.f32.mrb[0].mxu0
        %v1937 = vadd.f32 0.0, %v1936
        %v1938 = vpop.f32.mrb[0].mxu0
        %1939 = vmatprep.mubr.bf16.mxu0 0
        %1940 = vmatmul.mubr.bf16.gmra.mrb[0].mxu0 %v1877
        %v1941 = vpop.f32.mrb[0].mxu0
        %v1942 = vadd.f32 0.0, %v1941
        %v1943 = vpop.f32.mrb[0].mxu0
        %v1944 = vpop.f32.mrb[0].mxu0
        %v1945 = vadd.f32 0.0, %v1944
        %v1946 = vpop.f32.mrb[0].mxu0
        %1947 = vmatprep.mubr.bf16.mxu0 0
        %1948 = vmatmul.mubr.bf16.gmra.mrb[0].mxu0 %v1878
        %v1949 = vpop.f32.mrb[0].mxu0
        %v1950 = vadd.f32 0.0, %v1949
        %v1951 = vpop.f32.mrb[0].mxu0
        %v1952 = vpop.f32.mrb[0].mxu0
        %v1953 = vadd.f32 0.0, %v1952
        %v1954 = vpop.f32.mrb[0].mxu0
        %1955 = vmatprep.mubr.bf16.mxu0 0
        %1956 = vmatmul.mubr.bf16.gmra.mrb[0].mxu0 %v1879
        %v1957 = vpop.f32.mrb[0].mxu0
        %v1958 = vadd.f32 0.0, %v1957
        %v1959 = vpop.f32.mrb[0].mxu0
        %v1960 = vpop.f32.mrb[0].mxu0
        %v1961 = vadd.f32 0.0, %v1960
        %v1962 = vpop.f32.mrb[0].mxu0
        %1963 = vmatprep.mubr.bf16.mxu0 0
        %1964 = vmatmul.mubr.bf16.gmra.mrb[0].mxu0 %v1880
        %v1965 = vpop.f32.mrb[0].mxu0
        %v1966 = vadd.f32 0.0, %v1965
        %v1967 = vpop.f32.mrb[0].mxu0
        %v1968 = vpop.f32.mrb[0].mxu0
        %v1969 = vadd.f32 0.0, %v1968
        %v1970 = vpop.f32.mrb[0].mxu0
        %1971 = vmatprep.mubr.bf16.mxu0 0
        %1972 = vmatmul.mubr.bf16.gmra.mrb[0].mxu0 %v1881
        %v1973 = vpop.f32.mrb[0].mxu0
        %v1974 = vadd.f32 0.0, %v1973
        %v1975 = vpop.f32.mrb[0].mxu0
        %v1976 = vpop.f32.mrb[0].mxu0
        %v1977 = vadd.f32 0.0, %v1976
        %v1978 = vpop.f32.mrb[0].mxu0
        %1979 = vmatprep.mubr.bf16.mxu0 0
        %1980 = vmatmul.mubr.bf16.gmra.mrb[0].mxu0 %v1882
        %v1981 = vpop.f32.mrb[0].mxu0
        %v1982 = vadd.f32 0.0, %v1981
        %v1983 = vpop.f32.mrb[0].mxu0
        %v1984 = vpop.f32.mrb[0].mxu0
        %v1985 = vadd.f32 0.0, %v1984
        %v1986 = vpop.f32.mrb[0].mxu0
        %1987 = vdwg.mxu0
        %v1988 = vrcp.pop %v1844
        %v1989 = vrcp.pop %v1846
        %v1990 = vrcp.pop %v1848
        %v1991 = vrcp.pop %v1850
        %v1992 = vrcp.pop %v1852
        %v1993 = vrcp.pop %v1854
        %v1994 = vrcp.pop %v1856
        %v1995 = vrcp.pop %v1858
        %v1996 = vrcp.pop %v1860
        %v1997 = vrcp.pop %v1862
        %v1998 = vrcp.pop %v1864
        %v1999 = vrcp.pop %v1866
        %v2000 = vrcp.pop %v1868
        %v2001 = vrcp.pop %v1870
        %v2002 = vrcp.pop %v1872
        %v2003 = vrcp.pop %v1874
        %v2004 = vmul.f32 %v1926, %v1988
        %v2005 = vmul.f32 %v1929, %v1989
        %v2006 = vmul.f32 %v1934, %v1990
        %v2007 = vmul.f32 %v1937, %v1991
        %v2008 = vmul.f32 %v1942, %v1992
        %v2009 = vmul.f32 %v1945, %v1993
        %v2010 = vmul.f32 %v1950, %v1994
        %v2011 = vmul.f32 %v1953, %v1995
        %v2012 = vmul.f32 %v1958, %v1996
        %v2013 = vmul.f32 %v1961, %v1997
        %v2014 = vmul.f32 %v1966, %v1998
        %v2015 = vmul.f32 %v1969, %v1999
        %v2016 = vmul.f32 %v1974, %v2000
        %v2017 = vmul.f32 %v1977, %v2001
        %v2018 = vmul.f32 %v1982, %v2002
        %v2019 = vmul.f32 %v1985, %v2003
        %v2020 = vpack.c.bf16 %v2005, %v2004
        %v2021 = vpack.c.bf16 %v2007, %v2006
        %v2022 = vpack.c.bf16 %v2009, %v2008
        %v2023 = vpack.c.bf16 %v2011, %v2010
        %v2024 = vpack.c.bf16 %v2013, %v2012
        %v2025 = vpack.c.bf16 %v2015, %v2014
        %v2026 = vpack.c.bf16 %v2017, %v2016
        %v2027 = vpack.c.bf16 %v2019, %v2018
        %v2028 = vmul.f32 %v733, %v1426
        %v2029 = vmul.f32 %v737, %v1427
        %v2030 = vmul.f32 %v743, %v1428
        %v2031 = vmul.f32 %v747, %v1429
        %v2032 = vmul.f32 %v753, %v1430
        %v2033 = vmul.f32 %v757, %v1431
        %v2034 = vmul.f32 %v763, %v1432
        %v2035 = vmul.f32 %v767, %v1433
        %v2036 = vmul.f32 %v773, %v1434
        %v2037 = vmul.f32 %v777, %v1435
        %v2038 = vmul.f32 %v783, %v1436
        %v2039 = vmul.f32 %v787, %v1437
        %v2040 = vmul.f32 %v793, %v1438
        %v2041 = vmul.f32 %v797, %v1439
        %v2042 = vmul.f32 %v803, %v1440
        %v2043 = vmul.f32 %v807, %v1441
        %2044 = vrot.lane.b32.xlu0 %v733, 64
        %v2045 = vpop.permute.xlu0 %2044
        %2046 = vrot.lane.b32.xlu0 %v737, 64
        %v2047 = vpop.permute.xlu0 %2046
        %2048 = vrot.lane.b32.xlu0 %v743, 64
        %v2049 = vpop.permute.xlu0 %2048
        %2050 = vrot.lane.b32.xlu0 %v747, 64
        %v2051 = vpop.permute.xlu0 %2050
        %2052 = vrot.lane.b32.xlu0 %v753, 64
        %v2053 = vpop.permute.xlu0 %2052
        %2054 = vrot.lane.b32.xlu0 %v757, 64
        %v2055 = vpop.permute.xlu0 %2054
        %2056 = vrot.lane.b32.xlu0 %v763, 64
        %v2057 = vpop.permute.xlu0 %2056
        %2058 = vrot.lane.b32.xlu0 %v767, 64
        %v2059 = vpop.permute.xlu0 %2058
        %2060 = vrot.lane.b32.xlu0 %v773, 64
        %v2061 = vpop.permute.xlu0 %2060
        %2062 = vrot.lane.b32.xlu0 %v777, 64
        %v2063 = vpop.permute.xlu0 %2062
        %2064 = vrot.lane.b32.xlu0 %v783, 64
        %v2065 = vpop.permute.xlu0 %2064
        %2066 = vrot.lane.b32.xlu0 %v787, 64
        %v2067 = vpop.permute.xlu0 %2066
        %2068 = vrot.lane.b32.xlu0 %v793, 64
        %v2069 = vpop.permute.xlu0 %2068
        %2070 = vrot.lane.b32.xlu0 %v797, 64
        %v2071 = vpop.permute.xlu0 %2070
        %2072 = vrot.lane.b32.xlu0 %v803, 64
        %v2073 = vpop.permute.xlu0 %2072
        %2074 = vrot.lane.b32.xlu0 %v807, 64
        %v2075 = vpop.permute.xlu0 %2074
        %v2076 = vmul.f32 %v2045, %v1490
        %v2077 = vmul.f32 %v2047, %v1491
        %v2078 = vmul.f32 %v2049, %v1492
        %v2079 = vmul.f32 %v2051, %v1493
        %v2080 = vmul.f32 %v2053, %v1494
        %v2081 = vmul.f32 %v2055, %v1495
        %v2082 = vmul.f32 %v2057, %v1496
        %v2083 = vmul.f32 %v2059, %v1497
        %v2084 = vmul.f32 %v2061, %v1498
        %v2085 = vmul.f32 %v2063, %v1499
        %v2086 = vmul.f32 %v2065, %v1500
        %v2087 = vmul.f32 %v2067, %v1501
        %v2088 = vmul.f32 %v2069, %v1502
        %v2089 = vmul.f32 %v2071, %v1503
        %v2090 = vmul.f32 %v2073, %v1504
        %v2091 = vmul.f32 %v2075, %v1505
        %v2092 = vadd.f32 %v2028, %v2076
        %v2093 = vadd.f32 %v2029, %v2077
        %v2094 = vadd.f32 %v2030, %v2078
        %v2095 = vadd.f32 %v2031, %v2079
        %v2096 = vadd.f32 %v2032, %v2080
        %v2097 = vadd.f32 %v2033, %v2081
        %v2098 = vadd.f32 %v2034, %v2082
        %v2099 = vadd.f32 %v2035, %v2083
        %v2100 = vadd.f32 %v2036, %v2084
        %v2101 = vadd.f32 %v2037, %v2085
        %v2102 = vadd.f32 %v2038, %v2086
        %v2103 = vadd.f32 %v2039, %v2087
        %v2104 = vadd.f32 %v2040, %v2088
        %v2105 = vadd.f32 %v2041, %v2089
        %v2106 = vadd.f32 %v2042, %v2090
        %v2107 = vadd.f32 %v2043, %v2091
        %v2108 = vmul.f32 %v1006, %v1538
        %v2109 = vmul.f32 %v1010, %v1539
        %v2110 = vmul.f32 %v1016, %v1540
        %v2111 = vmul.f32 %v1020, %v1541
        %v2112 = vmul.f32 %v1026, %v1542
        %v2113 = vmul.f32 %v1030, %v1543
        %v2114 = vmul.f32 %v1036, %v1544
        %v2115 = vmul.f32 %v1040, %v1545
        %v2116 = vmul.f32 %v1046, %v1546
        %v2117 = vmul.f32 %v1050, %v1547
        %v2118 = vmul.f32 %v1056, %v1548
        %v2119 = vmul.f32 %v1060, %v1549
        %v2120 = vmul.f32 %v1066, %v1550
        %v2121 = vmul.f32 %v1070, %v1551
        %v2122 = vmul.f32 %v1076, %v1552
        %v2123 = vmul.f32 %v1080, %v1553
        %2124 = vrot.lane.b32.xlu0 %v1006, 64
        %v2125 = vpop.permute.xlu0 %2124
        %2126 = vrot.lane.b32.xlu0 %v1010, 64
        %v2127 = vpop.permute.xlu0 %2126
        %2128 = vrot.lane.b32.xlu0 %v1016, 64
        %v2129 = vpop.permute.xlu0 %2128
        %2130 = vrot.lane.b32.xlu0 %v1020, 64
        %v2131 = vpop.permute.xlu0 %2130
        %2132 = vrot.lane.b32.xlu0 %v1026, 64
        %v2133 = vpop.permute.xlu0 %2132
        %2134 = vrot.lane.b32.xlu0 %v1030, 64
        %v2135 = vpop.permute.xlu0 %2134
        %2136 = vrot.lane.b32.xlu0 %v1036, 64
        %v2137 = vpop.permute.xlu0 %2136
        %2138 = vrot.lane.b32.xlu0 %v1040, 64
        %v2139 = vpop.permute.xlu0 %2138
        %2140 = vrot.lane.b32.xlu0 %v1046, 64
        %v2141 = vpop.permute.xlu0 %2140
        %2142 = vrot.lane.b32.xlu0 %v1050, 64
        %v2143 = vpop.permute.xlu0 %2142
        %2144 = vrot.lane.b32.xlu0 %v1056, 64
        %v2145 = vpop.permute.xlu0 %2144
        %2146 = vrot.lane.b32.xlu0 %v1060, 64
        %v2147 = vpop.permute.xlu0 %2146
        %2148 = vrot.lane.b32.xlu0 %v1066, 64
        %v2149 = vpop.permute.xlu0 %2148
        %2150 = vrot.lane.b32.xlu0 %v1070, 64
        %v2151 = vpop.permute.xlu0 %2150
        %2152 = vrot.lane.b32.xlu0 %v1076, 64
        %v2153 = vpop.permute.xlu0 %2152
        %2154 = vrot.lane.b32.xlu0 %v1080, 64
        %v2155 = vpop.permute.xlu0 %2154
        %v2156 = vmul.f32 %v2125, %v1602
        %v2157 = vmul.f32 %v2127, %v1603
        %v2158 = vmul.f32 %v2129, %v1604
        %v2159 = vmul.f32 %v2131, %v1605
        %v2160 = vmul.f32 %v2133, %v1606
        %v2161 = vmul.f32 %v2135, %v1607
        %v2162 = vmul.f32 %v2137, %v1608
        %v2163 = vmul.f32 %v2139, %v1609
        %v2164 = vmul.f32 %v2141, %v1610
        %v2165 = vmul.f32 %v2143, %v1611
        %v2166 = vmul.f32 %v2145, %v1612
        %v2167 = vmul.f32 %v2147, %v1613
        %v2168 = vmul.f32 %v2149, %v1614
        %v2169 = vmul.f32 %v2151, %v1615
        %v2170 = vmul.f32 %v2153, %v1616
        %v2171 = vmul.f32 %v2155, %v1617
        %v2172 = vadd.f32 %v2108, %v2156
        %v2173 = vadd.f32 %v2109, %v2157
        %v2174 = vadd.f32 %v2110, %v2158
        %v2175 = vadd.f32 %v2111, %v2159
        %v2176 = vadd.f32 %v2112, %v2160
        %v2177 = vadd.f32 %v2113, %v2161
        %v2178 = vadd.f32 %v2114, %v2162
        %v2179 = vadd.f32 %v2115, %v2163
        %v2180 = vadd.f32 %v2116, %v2164
        %v2181 = vadd.f32 %v2117, %v2165
        %v2182 = vadd.f32 %v2118, %v2166
        %v2183 = vadd.f32 %v2119, %v2167
        %v2184 = vadd.f32 %v2120, %v2168
        %v2185 = vadd.f32 %v2121, %v2169
        %v2186 = vadd.f32 %v2122, %v2170
        %v2187 = vadd.f32 %v2123, %v2171
        %v2188 = vpack.c.bf16 %v2093, %v2092
        %v2189 = vpack.c.bf16 %v2095, %v2094
        %v2190 = vpack.c.bf16 %v2097, %v2096
        %v2191 = vpack.c.bf16 %v2099, %v2098
        %v2192 = vpack.c.bf16 %v2101, %v2100
        %v2193 = vpack.c.bf16 %v2103, %v2102
        %v2194 = vpack.c.bf16 %v2105, %v2104
        %v2195 = vpack.c.bf16 %v2107, %v2106
        %v2196 = vpack.c.bf16 %v2173, %v2172
        %v2197 = vpack.c.bf16 %v2175, %v2174
        %v2198 = vpack.c.bf16 %v2177, %v2176
        %v2199 = vpack.c.bf16 %v2179, %v2178
        %v2200 = vpack.c.bf16 %v2181, %v2180
        %v2201 = vpack.c.bf16 %v2183, %v2182
        %v2202 = vpack.c.bf16 %v2185, %v2184
        %v2203 = vpack.c.bf16 %v2187, %v2186
        %2204 = vmatprep.subr.bf16.mxu0 0
        %2205 = vmatpush1.bf16.xpose.msra.mxu0 %v2196
        %2206 = vmatprep.subr.bf16.mxu0 0
        %2207 = vmatpush1.bf16.xpose.msra.mxu0 %v2197
        %2208 = vmatprep.subr.bf16.mxu0 0
        %2209 = vmatpush1.bf16.xpose.msra.mxu0 %v2198
        %2210 = vmatprep.subr.bf16.mxu0 0
        %2211 = vmatpush1.bf16.xpose.msra.mxu0 %v2199
        %2212 = vmatprep.subr.bf16.mxu0 0
        %2213 = vmatpush1.bf16.xpose.msra.mxu0 %v2200
        %2214 = vmatprep.subr.bf16.mxu0 0
        %2215 = vmatpush1.bf16.xpose.msra.mxu0 %v2201
        %2216 = vmatprep.subr.bf16.mxu0 0
        %2217 = vmatpush1.bf16.xpose.msra.mxu0 %v2202
        %2218 = vmatprep.subr.bf16.mxu0 0
        %2219 = vmatpush1.bf16.xpose.msra.mxu0 %v2203
        %2220 = vmatprep.subr.bf16.mxu0 0
        %2221 = vmatpush1.bf16.xpose.msra.mxu0 0
        %2222 = vmatprep.subr.bf16.mxu0 0
        %2223 = vmatpush1.bf16.xpose.msra.mxu0 0
        %2224 = vmatprep.subr.bf16.mxu0 0
        %2225 = vmatpush1.bf16.xpose.msra.mxu0 0
        %2226 = vmatprep.subr.bf16.mxu0 0
        %2227 = vmatpush1.bf16.xpose.msra.mxu0 0
        %2228 = vmatprep.subr.bf16.mxu0 0
        %2229 = vmatpush1.bf16.xpose.msra.mxu0 0
        %2230 = vmatprep.subr.bf16.mxu0 0
        %2231 = vmatpush1.bf16.xpose.msra.mxu0 0
        %2232 = vmatprep.subr.bf16.mxu0 0
        %2233 = vmatpush1.bf16.xpose.msra.mxu0 0
        %2234 = vmatprep.subr.bf16.mxu0 0
        %2235 = vmatpush1.bf16.xpose.msra.mxu0 0
        %2236 = vmatprep.mubr.bf16.mxu0 0
        %2237 = vmatmul.mubr.bf16.gmra.mrb[0].mxu0 %v2188
        %v2238 = vpop.f32.mrb[0].mxu0
        %v2239 = vadd.f32 0.0, %v2238
        %v2240 = vpop.f32.mrb[0].mxu0
        %v2241 = vpop.f32.mrb[0].mxu0
        %v2242 = vadd.f32 0.0, %v2241
        %v2243 = vpop.f32.mrb[0].mxu0
        %2244 = vmatprep.mubr.bf16.mxu0 0
        %2245 = vmatmul.mubr.bf16.gmra.mrb[0].mxu0 %v2189
        %v2246 = vpop.f32.mrb[0].mxu0
        %v2247 = vadd.f32 0.0, %v2246
        %v2248 = vpop.f32.mrb[0].mxu0
        %v2249 = vpop.f32.mrb[0].mxu0
        %v2250 = vadd.f32 0.0, %v2249
        %v2251 = vpop.f32.mrb[0].mxu0
        %2252 = vmatprep.mubr.bf16.mxu0 0
        %2253 = vmatmul.mubr.bf16.gmra.mrb[0].mxu0 %v2190
        %v2254 = vpop.f32.mrb[0].mxu0
        %v2255 = vadd.f32 0.0, %v2254
        %v2256 = vpop.f32.mrb[0].mxu0
        %v2257 = vpop.f32.mrb[0].mxu0
        %v2258 = vadd.f32 0.0, %v2257
        %v2259 = vpop.f32.mrb[0].mxu0
        %2260 = vmatprep.mubr.bf16.mxu0 0
        %2261 = vmatmul.mubr.bf16.gmra.mrb[0].mxu0 %v2191
        %v2262 = vpop.f32.mrb[0].mxu0
        %v2263 = vadd.f32 0.0, %v2262
        %v2264 = vpop.f32.mrb[0].mxu0
        %v2265 = vpop.f32.mrb[0].mxu0
        %v2266 = vadd.f32 0.0, %v2265
        %v2267 = vpop.f32.mrb[0].mxu0
        %2268 = vmatprep.mubr.bf16.mxu0 0
        %2269 = vmatmul.mubr.bf16.gmra.mrb[0].mxu0 %v2192
        %v2270 = vpop.f32.mrb[0].mxu0
        %v2271 = vadd.f32 0.0, %v2270
        %v2272 = vpop.f32.mrb[0].mxu0
        %v2273 = vpop.f32.mrb[0].mxu0
        %v2274 = vadd.f32 0.0, %v2273
        %v2275 = vpop.f32.mrb[0].mxu0
        %2276 = vmatprep.mubr.bf16.mxu0 0
        %2277 = vmatmul.mubr.bf16.gmra.mrb[0].mxu0 %v2193
        %v2278 = vpop.f32.mrb[0].mxu0
        %v2279 = vadd.f32 0.0, %v2278
        %v2280 = vpop.f32.mrb[0].mxu0
        %v2281 = vpop.f32.mrb[0].mxu0
        %v2282 = vadd.f32 0.0, %v2281
        %v2283 = vpop.f32.mrb[0].mxu0
        %2284 = vmatprep.mubr.bf16.mxu0 0
        %2285 = vmatmul.mubr.bf16.gmra.mrb[0].mxu0 %v2194
        %v2286 = vpop.f32.mrb[0].mxu0
        %v2287 = vadd.f32 0.0, %v2286
        %v2288 = vpop.f32.mrb[0].mxu0
        %v2289 = vpop.f32.mrb[0].mxu0
        %v2290 = vadd.f32 0.0, %v2289
        %v2291 = vpop.f32.mrb[0].mxu0
        %2292 = vmatprep.mubr.bf16.mxu0 0
        %2293 = vmatmul.mubr.bf16.gmra.mrb[0].mxu0 %v2195
        %v2294 = vpop.f32.mrb[0].mxu0
        %v2295 = vadd.f32 0.0, %v2294
        %v2296 = vpop.f32.mrb[0].mxu0
        %v2297 = vpop.f32.mrb[0].mxu0
        %v2298 = vadd.f32 0.0, %v2297
        %v2299 = vpop.f32.mrb[0].mxu0
        %2300 = vdwg.mxu0
        %2301 = vmax.xlane.f32.xlu0 %v2239
        %v2302 = vpop.xlane.xlu0 %2301
        %2303 = vmax.xlane.f32.xlu0 %v2242
        %v2304 = vpop.xlane.xlu0 %2303
        %2305 = vmax.xlane.f32.xlu0 %v2247
        %v2306 = vpop.xlane.xlu0 %2305
        %2307 = vmax.xlane.f32.xlu0 %v2250
        %v2308 = vpop.xlane.xlu0 %2307
        %2309 = vmax.xlane.f32.xlu0 %v2255
        %v2310 = vpop.xlane.xlu0 %2309
        %2311 = vmax.xlane.f32.xlu0 %v2258
        %v2312 = vpop.xlane.xlu0 %2311
        %2313 = vmax.xlane.f32.xlu0 %v2263
        %v2314 = vpop.xlane.xlu0 %2313
        %2315 = vmax.xlane.f32.xlu0 %v2266
        %v2316 = vpop.xlane.xlu0 %2315
        %2317 = vmax.xlane.f32.xlu0 %v2271
        %v2318 = vpop.xlane.xlu0 %2317
        %2319 = vmax.xlane.f32.xlu0 %v2274
        %v2320 = vpop.xlane.xlu0 %2319
        %2321 = vmax.xlane.f32.xlu0 %v2279
        %v2322 = vpop.xlane.xlu0 %2321
        %2323 = vmax.xlane.f32.xlu0 %v2282
        %v2324 = vpop.xlane.xlu0 %2323
        %2325 = vmax.xlane.f32.xlu0 %v2287
        %v2326 = vpop.xlane.xlu0 %2325
        %2327 = vmax.xlane.f32.xlu0 %v2290
        %v2328 = vpop.xlane.xlu0 %2327
        %2329 = vmax.xlane.f32.xlu0 %v2295
        %v2330 = vpop.xlane.xlu0 %2329
        %2331 = vmax.xlane.f32.xlu0 %v2298
        %v2332 = vpop.xlane.xlu0 %2331
        %v2333 = vsub.f32 %v2239, %v2302
        %v2334 = vsub.f32 %v2242, %v2304
        %v2335 = vsub.f32 %v2247, %v2306
        %v2336 = vsub.f32 %v2250, %v2308
        %v2337 = vsub.f32 %v2255, %v2310
        %v2338 = vsub.f32 %v2258, %v2312
        %v2339 = vsub.f32 %v2263, %v2314
        %v2340 = vsub.f32 %v2266, %v2316
        %v2341 = vsub.f32 %v2271, %v2318
        %v2342 = vsub.f32 %v2274, %v2320
        %v2343 = vsub.f32 %v2279, %v2322
        %v2344 = vsub.f32 %v2282, %v2324
        %v2345 = vsub.f32 %v2287, %v2326
        %v2346 = vsub.f32 %v2290, %v2328
        %v2347 = vsub.f32 %v2295, %v2330
        %v2348 = vsub.f32 %v2298, %v2332
        %v2349 = vmul.f32 %v2333, 1.442695
        %v2350 = vpow.pop %v2349
        %v2351 = vmul.f32 %v2334, 1.442695
        %v2352 = vpow.pop %v2351
        %v2353 = vmul.f32 %v2335, 1.442695
        %v2354 = vpow.pop %v2353
        %v2355 = vmul.f32 %v2336, 1.442695
        %v2356 = vpow.pop %v2355
        %v2357 = vmul.f32 %v2337, 1.442695
        %v2358 = vpow.pop %v2357
        %v2359 = vmul.f32 %v2338, 1.442695
        %v2360 = vpow.pop %v2359
        %v2361 = vmul.f32 %v2339, 1.442695
        %v2362 = vpow.pop %v2361
        %v2363 = vmul.f32 %v2340, 1.442695
        %v2364 = vpow.pop %v2363
        %v2365 = vmul.f32 %v2341, 1.442695
        %v2366 = vpow.pop %v2365
        %v2367 = vmul.f32 %v2342, 1.442695
        %v2368 = vpow.pop %v2367
        %v2369 = vmul.f32 %v2343, 1.442695
        %v2370 = vpow.pop %v2369
        %v2371 = vmul.f32 %v2344, 1.442695
        %v2372 = vpow.pop %v2371
        %v2373 = vmul.f32 %v2345, 1.442695
        %v2374 = vpow.pop %v2373
        %v2375 = vmul.f32 %v2346, 1.442695
        %v2376 = vpow.pop %v2375
        %v2377 = vmul.f32 %v2347, 1.442695
        %v2378 = vpow.pop %v2377
        %v2379 = vmul.f32 %v2348, 1.442695
        %v2380 = vpow.pop %v2379
        %2381 = vadd.xlane.f32.xlu0 %v2350
        %v2382 = vpop.xlane.xlu0 %2381
        %2383 = vadd.xlane.f32.xlu0 %v2352
        %v2384 = vpop.xlane.xlu0 %2383
        %2385 = vadd.xlane.f32.xlu0 %v2354
        %v2386 = vpop.xlane.xlu0 %2385
        %2387 = vadd.xlane.f32.xlu0 %v2356
        %v2388 = vpop.xlane.xlu0 %2387
        %2389 = vadd.xlane.f32.xlu0 %v2358
        %v2390 = vpop.xlane.xlu0 %2389
        %2391 = vadd.xlane.f32.xlu0 %v2360
        %v2392 = vpop.xlane.xlu0 %2391
        %2393 = vadd.xlane.f32.xlu0 %v2362
        %v2394 = vpop.xlane.xlu0 %2393
        %2395 = vadd.xlane.f32.xlu0 %v2364
        %v2396 = vpop.xlane.xlu0 %2395
        %2397 = vadd.xlane.f32.xlu0 %v2366
        %v2398 = vpop.xlane.xlu0 %2397
        %2399 = vadd.xlane.f32.xlu0 %v2368
        %v2400 = vpop.xlane.xlu0 %2399
        %2401 = vadd.xlane.f32.xlu0 %v2370
        %v2402 = vpop.xlane.xlu0 %2401
        %2403 = vadd.xlane.f32.xlu0 %v2372
        %v2404 = vpop.xlane.xlu0 %2403
        %2405 = vadd.xlane.f32.xlu0 %v2374
        %v2406 = vpop.xlane.xlu0 %2405
        %2407 = vadd.xlane.f32.xlu0 %v2376
        %v2408 = vpop.xlane.xlu0 %2407
        %2409 = vadd.xlane.f32.xlu0 %v2378
        %v2410 = vpop.xlane.xlu0 %2409
        %2411 = vadd.xlane.f32.xlu0 %v2380
        %v2412 = vpop.xlane.xlu0 %2411
        %v2413 = vpack.c.bf16 %v2352, %v2350
        %v2414 = vpack.c.bf16 %v2356, %v2354
        %v2415 = vpack.c.bf16 %v2360, %v2358
        %v2416 = vpack.c.bf16 %v2364, %v2362
        %v2417 = vpack.c.bf16 %v2368, %v2366
        %v2418 = vpack.c.bf16 %v2372, %v2370
        %v2419 = vpack.c.bf16 %v2376, %v2374
        %v2420 = vpack.c.bf16 %v2380, %v2378
        %v2421 = vpack.c.bf16 %v1283, %v1279
        %v2422 = vpack.c.bf16 %v1293, %v1289
        %v2423 = vpack.c.bf16 %v1303, %v1299
        %v2424 = vpack.c.bf16 %v1313, %v1309
        %v2425 = vpack.c.bf16 %v1323, %v1319
        %v2426 = vpack.c.bf16 %v1333, %v1329
        %v2427 = vpack.c.bf16 %v1343, %v1339
        %v2428 = vpack.c.bf16 %v1353, %v1349
        %2429 = vmatprep.subr.bf16.mxu0 0
        %2430 = vmatpush1.bf16.msra.mxu0 %v2421
        %2431 = vmatprep.subr.bf16.mxu0 0
        %2432 = vmatpush1.bf16.msra.mxu0 %v2422
        %2433 = vmatprep.subr.bf16.mxu0 0
        %2434 = vmatpush1.bf16.msra.mxu0 %v2423
        %2435 = vmatprep.subr.bf16.mxu0 0
        %2436 = vmatpush1.bf16.msra.mxu0 %v2424
        %2437 = vmatprep.subr.bf16.mxu0 0
        %2438 = vmatpush1.bf16.msra.mxu0 %v2425
        %2439 = vmatprep.subr.bf16.mxu0 0
        %2440 = vmatpush1.bf16.msra.mxu0 %v2426
        %2441 = vmatprep.subr.bf16.mxu0 0
        %2442 = vmatpush1.bf16.msra.mxu0 %v2427
        %2443 = vmatprep.subr.bf16.mxu0 0
        %2444 = vmatpush1.bf16.msra.mxu0 %v2428
        %2445 = vmatprep.subr.bf16.mxu0 0
        %2446 = vmatpush1.bf16.msra.mxu0 0
        %2447 = vmatprep.subr.bf16.mxu0 0
        %2448 = vmatpush1.bf16.msra.mxu0 0
        %2449 = vmatprep.subr.bf16.mxu0 0
        %2450 = vmatpush1.bf16.msra.mxu0 0
        %2451 = vmatprep.subr.bf16.mxu0 0
        %2452 = vmatpush1.bf16.msra.mxu0 0
        %2453 = vmatprep.subr.bf16.mxu0 0
        %2454 = vmatpush1.bf16.msra.mxu0 0
        %2455 = vmatprep.subr.bf16.mxu0 0
        %2456 = vmatpush1.bf16.msra.mxu0 0
        %2457 = vmatprep.subr.bf16.mxu0 0
        %2458 = vmatpush1.bf16.msra.mxu0 0
        %2459 = vmatprep.subr.bf16.mxu0 0
        %2460 = vmatpush1.bf16.msra.mxu0 0
        %2461 = vmatprep.mubr.bf16.mxu0 0
        %2462 = vmatmul.mubr.bf16.gmra.mrb[0].mxu0 %v2413
        %v2463 = vpop.f32.mrb[0].mxu0
        %v2464 = vadd.f32 0.0, %v2463
        %v2465 = vpop.f32.mrb[0].mxu0
        %v2466 = vpop.f32.mrb[0].mxu0
        %v2467 = vadd.f32 0.0, %v2466
        %v2468 = vpop.f32.mrb[0].mxu0
        %2469 = vmatprep.mubr.bf16.mxu0 0
        %2470 = vmatmul.mubr.bf16.gmra.mrb[0].mxu0 %v2414
        %v2471 = vpop.f32.mrb[0].mxu0
        %v2472 = vadd.f32 0.0, %v2471
        %v2473 = vpop.f32.mrb[0].mxu0
        %v2474 = vpop.f32.mrb[0].mxu0
        %v2475 = vadd.f32 0.0, %v2474
        %v2476 = vpop.f32.mrb[0].mxu0
        %2477 = vmatprep.mubr.bf16.mxu0 0
        %2478 = vmatmul.mubr.bf16.gmra.mrb[0].mxu0 %v2415
        %v2479 = vpop.f32.mrb[0].mxu0
        %v2480 = vadd.f32 0.0, %v2479
        %v2481 = vpop.f32.mrb[0].mxu0
        %v2482 = vpop.f32.mrb[0].mxu0
        %v2483 = vadd.f32 0.0, %v2482
        %v2484 = vpop.f32.mrb[0].mxu0
        %2485 = vmatprep.mubr.bf16.mxu0 0
        %2486 = vmatmul.mubr.bf16.gmra.mrb[0].mxu0 %v2416
        %v2487 = vpop.f32.mrb[0].mxu0
        %v2488 = vadd.f32 0.0, %v2487
        %v2489 = vpop.f32.mrb[0].mxu0
        %v2490 = vpop.f32.mrb[0].mxu0
        %v2491 = vadd.f32 0.0, %v2490
        %v2492 = vpop.f32.mrb[0].mxu0
        %2493 = vmatprep.mubr.bf16.mxu0 0
        %2494 = vmatmul.mubr.bf16.gmra.mrb[0].mxu0 %v2417
        %v2495 = vpop.f32.mrb[0].mxu0
        %v2496 = vadd.f32 0.0, %v2495
        %v2497 = vpop.f32.mrb[0].mxu0
        %v2498 = vpop.f32.mrb[0].mxu0
        %v2499 = vadd.f32 0.0, %v2498
        %v2500 = vpop.f32.mrb[0].mxu0
        %2501 = vmatprep.mubr.bf16.mxu0 0
        %2502 = vmatmul.mubr.bf16.gmra.mrb[0].mxu0 %v2418
        %v2503 = vpop.f32.mrb[0].mxu0
        %v2504 = vadd.f32 0.0, %v2503
        %v2505 = vpop.f32.mrb[0].mxu0
        %v2506 = vpop.f32.mrb[0].mxu0
        %v2507 = vadd.f32 0.0, %v2506
        %v2508 = vpop.f32.mrb[0].mxu0
        %2509 = vmatprep.mubr.bf16.mxu0 0
        %2510 = vmatmul.mubr.bf16.gmra.mrb[0].mxu0 %v2419
        %v2511 = vpop.f32.mrb[0].mxu0
        %v2512 = vadd.f32 0.0, %v2511
        %v2513 = vpop.f32.mrb[0].mxu0
        %v2514 = vpop.f32.mrb[0].mxu0
        %v2515 = vadd.f32 0.0, %v2514
        %v2516 = vpop.f32.mrb[0].mxu0
        %2517 = vmatprep.mubr.bf16.mxu0 0
        %2518 = vmatmul.mubr.bf16.gmra.mrb[0].mxu0 %v2420
        %v2519 = vpop.f32.mrb[0].mxu0
        %v2520 = vadd.f32 0.0, %v2519
        %v2521 = vpop.f32.mrb[0].mxu0
        %v2522 = vpop.f32.mrb[0].mxu0
        %v2523 = vadd.f32 0.0, %v2522
        %v2524 = vpop.f32.mrb[0].mxu0
        %2525 = vdwg.mxu0
        %v2526 = vrcp.pop %v2382
        %v2527 = vrcp.pop %v2384
        %v2528 = vrcp.pop %v2386
        %v2529 = vrcp.pop %v2388
        %v2530 = vrcp.pop %v2390
        %v2531 = vrcp.pop %v2392
        %v2532 = vrcp.pop %v2394
        %v2533 = vrcp.pop %v2396
        %v2534 = vrcp.pop %v2398
        %v2535 = vrcp.pop %v2400
        %v2536 = vrcp.pop %v2402
        %v2537 = vrcp.pop %v2404
        %v2538 = vrcp.pop %v2406
        %v2539 = vrcp.pop %v2408
        %v2540 = vrcp.pop %v2410
        %v2541 = vrcp.pop %v2412
        %v2542 = vmul.f32 %v2464, %v2526
        %v2543 = vmul.f32 %v2467, %v2527
        %v2544 = vmul.f32 %v2472, %v2528
        %v2545 = vmul.f32 %v2475, %v2529
        %v2546 = vmul.f32 %v2480, %v2530
        %v2547 = vmul.f32 %v2483, %v2531
        %v2548 = vmul.f32 %v2488, %v2532
        %v2549 = vmul.f32 %v2491, %v2533
        %v2550 = vmul.f32 %v2496, %v2534
        %v2551 = vmul.f32 %v2499, %v2535
        %v2552 = vmul.f32 %v2504, %v2536
        %v2553 = vmul.f32 %v2507, %v2537
        %v2554 = vmul.f32 %v2512, %v2538
        %v2555 = vmul.f32 %v2515, %v2539
        %v2556 = vmul.f32 %v2520, %v2540
        %v2557 = vmul.f32 %v2523, %v2541
        %v2558 = vpack.c.bf16 %v2543, %v2542
        %v2559 = vpack.c.bf16 %v2545, %v2544
        %v2560 = vpack.c.bf16 %v2547, %v2546
        %v2561 = vpack.c.bf16 %v2549, %v2548
        %v2562 = vpack.c.bf16 %v2551, %v2550
        %v2563 = vpack.c.bf16 %v2553, %v2552
        %v2564 = vpack.c.bf16 %v2555, %v2554
        %v2565 = vpack.c.bf16 %v2557, %v2556
        %v2566 = vld [vmem:[#allocation13] sm:$0xf]
        %v2567 = vld [vmem:[#allocation13 + $0x4] sm:$0xf]
        %v2568 = vld [vmem:[#allocation13 + $0x8] sm:$0xf]
        %v2569 = vld [vmem:[#allocation13 + $0xc] sm:$0xf]
        %v2570 = vld [vmem:[#allocation13 + $0x10] sm:$0xf]
        %v2571 = vld [vmem:[#allocation13 + $0x14] sm:$0xf]
        %v2572 = vld [vmem:[#allocation13 + $0x18] sm:$0xf]
        %v2573 = vld [vmem:[#allocation13 + $0x1c] sm:$0xf]
        %v2574 = vld [vmem:[#allocation13 + $0x20] sm:$0xf]
        %v2575 = vld [vmem:[#allocation13 + $0x24] sm:$0xf]
        %v2576 = vld [vmem:[#allocation13 + $0x28] sm:$0xf]
        %v2577 = vld [vmem:[#allocation13 + $0x2c] sm:$0xf]
        %v2578 = vld [vmem:[#allocation13 + $0x30] sm:$0xf]
        %v2579 = vld [vmem:[#allocation13 + $0x34] sm:$0xf]
        %v2580 = vld [vmem:[#allocation13 + $0x38] sm:$0xf]
        %v2581 = vld [vmem:[#allocation13 + $0x3c] sm:$0xf]
        %v2582 = vld [vmem:[#allocation13 + $0x40] sm:$0xf]
        %v2583 = vld [vmem:[#allocation13 + $0x44] sm:$0xf]
        %v2584 = vld [vmem:[#allocation13 + $0x48] sm:$0xf]
        %v2585 = vld [vmem:[#allocation13 + $0x4c] sm:$0xf]
        %v2586 = vld [vmem:[#allocation13 + $0x50] sm:$0xf]
        %v2587 = vld [vmem:[#allocation13 + $0x54] sm:$0xf]
        %v2588 = vld [vmem:[#allocation13 + $0x58] sm:$0xf]
        %v2589 = vld [vmem:[#allocation13 + $0x5c] sm:$0xf]
        %v2590 = vld [vmem:[#allocation13 + $0x60] sm:$0xf]
        %v2591 = vld [vmem:[#allocation13 + $0x64] sm:$0xf]
        %v2592 = vld [vmem:[#allocation13 + $0x68] sm:$0xf]
        %v2593 = vld [vmem:[#allocation13 + $0x6c] sm:$0xf]
        %v2594 = vld [vmem:[#allocation13 + $0x70] sm:$0xf]
        %v2595 = vld [vmem:[#allocation13 + $0x74] sm:$0xf]
        %v2596 = vld [vmem:[#allocation13 + $0x78] sm:$0xf]
        %v2597 = vld [vmem:[#allocation13 + $0x7c] sm:$0xf]
        %v2630 = vunpack.c.l.b16 %v2566
        %v2631 = vunpack.c.l.b16 %v2567
        %v2632 = vunpack.c.l.b16 %v2568
        %v2633 = vunpack.c.l.b16 %v2569
        %v2634 = vunpack.c.l.b16 %v2570
        %v2635 = vunpack.c.l.b16 %v2571
        %v2636 = vunpack.c.l.b16 %v2572
        %v2637 = vunpack.c.l.b16 %v2573
        %v2638 = vunpack.c.l.b16 %v2574
        %v2639 = vunpack.c.l.b16 %v2575
        %v2640 = vunpack.c.l.b16 %v2576
        %v2641 = vunpack.c.l.b16 %v2577
        %v2642 = vunpack.c.l.b16 %v2578
        %v2643 = vunpack.c.l.b16 %v2579
        %v2644 = vunpack.c.l.b16 %v2580
        %v2645 = vunpack.c.l.b16 %v2581
        %v2646 = vunpack.c.l.b16 %v2582
        %v2647 = vunpack.c.l.b16 %v2583
        %v2648 = vunpack.c.l.b16 %v2584
        %v2649 = vunpack.c.l.b16 %v2585
        %v2650 = vunpack.c.l.b16 %v2586
        %v2651 = vunpack.c.l.b16 %v2587
        %v2652 = vunpack.c.l.b16 %v2588
        %v2653 = vunpack.c.l.b16 %v2589
        %v2654 = vunpack.c.l.b16 %v2590
        %v2655 = vunpack.c.l.b16 %v2591
        %v2656 = vunpack.c.l.b16 %v2592
        %v2657 = vunpack.c.l.b16 %v2593
        %v2658 = vunpack.c.l.b16 %v2594
        %v2659 = vunpack.c.l.b16 %v2595
        %v2660 = vunpack.c.l.b16 %v2596
        %v2661 = vunpack.c.l.b16 %v2597
        %v2662 = vpack.c.b16 %v2631, %v2630
        %v2663 = vpack.c.b16 %v2633, %v2632
        %v2664 = vpack.c.b16 %v2635, %v2634
        %v2665 = vpack.c.b16 %v2637, %v2636
        %v2666 = vpack.c.b16 %v2639, %v2638
        %v2667 = vpack.c.b16 %v2641, %v2640
        %v2668 = vpack.c.b16 %v2643, %v2642
        %v2669 = vpack.c.b16 %v2645, %v2644
        %v2670 = vpack.c.b16 %v2647, %v2646
        %v2671 = vpack.c.b16 %v2649, %v2648
        %v2672 = vpack.c.b16 %v2651, %v2650
        %v2673 = vpack.c.b16 %v2653, %v2652
        %v2674 = vpack.c.b16 %v2655, %v2654
        %v2675 = vpack.c.b16 %v2657, %v2656
        %v2676 = vpack.c.b16 %v2659, %v2658
        %v2677 = vpack.c.b16 %v2661, %v2660
        %2694 = vmatprep.subr.bf16.mxu0 0
        %2695 = vmatpush1.bf16.msra.mxu0 %v2662
        %2696 = vmatprep.subr.bf16.mxu0 0
        %2697 = vmatpush1.bf16.msra.mxu0 %v2663
        %2698 = vmatprep.subr.bf16.mxu0 0
        %2699 = vmatpush1.bf16.msra.mxu0 %v2664
        %2700 = vmatprep.subr.bf16.mxu0 0
        %2701 = vmatpush1.bf16.msra.mxu0 %v2665
        %2702 = vmatprep.subr.bf16.mxu0 0
        %2703 = vmatpush1.bf16.msra.mxu0 %v2666
        %2704 = vmatprep.subr.bf16.mxu0 0
        %2705 = vmatpush1.bf16.msra.mxu0 %v2667
        %2706 = vmatprep.subr.bf16.mxu0 0
        %2707 = vmatpush1.bf16.msra.mxu0 %v2668
        %2708 = vmatprep.subr.bf16.mxu0 0
        %2709 = vmatpush1.bf16.msra.mxu0 %v2669
        %2710 = vmatprep.subr.bf16.mxu0 0
        %2711 = vmatpush1.bf16.msra.mxu0 %v2670
        %2712 = vmatprep.subr.bf16.mxu0 0
        %2713 = vmatpush1.bf16.msra.mxu0 %v2671
        %2714 = vmatprep.subr.bf16.mxu0 0
        %2715 = vmatpush1.bf16.msra.mxu0 %v2672
        %2716 = vmatprep.subr.bf16.mxu0 0
        %2717 = vmatpush1.bf16.msra.mxu0 %v2673
        %2718 = vmatprep.subr.bf16.mxu0 0
        %2719 = vmatpush1.bf16.msra.mxu0 %v2674
        %2720 = vmatprep.subr.bf16.mxu0 0
        %2721 = vmatpush1.bf16.msra.mxu0 %v2675
        %2722 = vmatprep.subr.bf16.mxu0 0
        %2723 = vmatpush1.bf16.msra.mxu0 %v2676
        %2724 = vmatprep.subr.bf16.mxu0 0
        %2725 = vmatpush1.bf16.msra.mxu0 %v2677
        %2726 = vmatprep.mubr.bf16.mxu0 %v2558
        %2727 = vmatmul.mubr.bf16.gmra.mrb[0].mxu0 %v2020
        %v2728 = vpop.f32.mrb[0].mxu0
        %v2729 = vadd.f32 0.0, %v2728
        %v2730 = vpop.f32.mrb[0].mxu0
        %v2731 = vpop.f32.mrb[0].mxu0
        %v2732 = vadd.f32 0.0, %v2731
        %v2733 = vpop.f32.mrb[0].mxu0
        %2734 = vmatprep.mubr.bf16.mxu0 %v2559
        %2735 = vmatmul.mubr.bf16.gmra.mrb[0].mxu0 %v2021
        %v2736 = vpop.f32.mrb[0].mxu0
        %v2737 = vadd.f32 0.0, %v2736
        %v2738 = vpop.f32.mrb[0].mxu0
        %v2739 = vpop.f32.mrb[0].mxu0
        %v2740 = vadd.f32 0.0, %v2739
        %v2741 = vpop.f32.mrb[0].mxu0
        %2742 = vmatprep.mubr.bf16.mxu0 %v2560
        %2743 = vmatmul.mubr.bf16.gmra.mrb[0].mxu0 %v2022
        %v2744 = vpop.f32.mrb[0].mxu0
        %v2745 = vadd.f32 0.0, %v2744
        %v2746 = vpop.f32.mrb[0].mxu0
        %v2747 = vpop.f32.mrb[0].mxu0
        %v2748 = vadd.f32 0.0, %v2747
        %v2749 = vpop.f32.mrb[0].mxu0
        %2750 = vmatprep.mubr.bf16.mxu0 %v2561
        %2751 = vmatmul.mubr.bf16.gmra.mrb[0].mxu0 %v2023
        %v2752 = vpop.f32.mrb[0].mxu0
        %v2753 = vadd.f32 0.0, %v2752
        %v2754 = vpop.f32.mrb[0].mxu0
        %v2755 = vpop.f32.mrb[0].mxu0
        %v2756 = vadd.f32 0.0, %v2755
        %v2757 = vpop.f32.mrb[0].mxu0
        %2758 = vmatprep.mubr.bf16.mxu0 %v2562
        %2759 = vmatmul.mubr.bf16.gmra.mrb[0].mxu0 %v2024
        %v2760 = vpop.f32.mrb[0].mxu0
        %v2761 = vadd.f32 0.0, %v2760
        %v2762 = vpop.f32.mrb[0].mxu0
        %v2763 = vpop.f32.mrb[0].mxu0
        %v2764 = vadd.f32 0.0, %v2763
        %v2765 = vpop.f32.mrb[0].mxu0
        %2766 = vmatprep.mubr.bf16.mxu0 %v2563
        %2767 = vmatmul.mubr.bf16.gmra.mrb[0].mxu0 %v2025
        %v2768 = vpop.f32.mrb[0].mxu0
        %v2769 = vadd.f32 0.0, %v2768
        %v2770 = vpop.f32.mrb[0].mxu0
        %v2771 = vpop.f32.mrb[0].mxu0
        %v2772 = vadd.f32 0.0, %v2771
        %v2773 = vpop.f32.mrb[0].mxu0
        %2774 = vmatprep.mubr.bf16.mxu0 %v2564
        %2775 = vmatmul.mubr.bf16.gmra.mrb[0].mxu0 %v2026
        %v2776 = vpop.f32.mrb[0].mxu0
        %v2777 = vadd.f32 0.0, %v2776
        %v2778 = vpop.f32.mrb[0].mxu0
        %v2779 = vpop.f32.mrb[0].mxu0
        %v2780 = vadd.f32 0.0, %v2779
        %v2781 = vpop.f32.mrb[0].mxu0
        %2782 = vmatprep.mubr.bf16.mxu0 %v2565
        %2783 = vmatmul.mubr.bf16.gmra.mrb[0].mxu0 %v2027
        %v2784 = vpop.f32.mrb[0].mxu0
        %v2785 = vadd.f32 0.0, %v2784
        %v2786 = vpop.f32.mrb[0].mxu0
        %v2787 = vpop.f32.mrb[0].mxu0
        %v2788 = vadd.f32 0.0, %v2787
        %v2789 = vpop.f32.mrb[0].mxu0
        %2790 = vdwg.mxu0
        %v2791 = vpack.c.bf16 %v2732, %v2729
        %v2792 = vpack.c.bf16 %v2740, %v2737
        %v2793 = vpack.c.bf16 %v2748, %v2745
        %v2794 = vpack.c.bf16 %v2756, %v2753
        %v2795 = vpack.c.bf16 %v2764, %v2761
        %v2796 = vpack.c.bf16 %v2772, %v2769
        %v2797 = vpack.c.bf16 %v2780, %v2777
        %v2798 = vpack.c.bf16 %v2788, %v2785
        %v2807 = vunpack.c.l.b16 %v2791
        %v2808 = vunpack.c.h.b16 %v2791
        %v2809 = vunpack.c.l.b16 %v2792
        %v2810 = vunpack.c.h.b16 %v2792
        %v2811 = vunpack.c.l.b16 %v2793
        %v2812 = vunpack.c.h.b16 %v2793
        %v2813 = vunpack.c.l.b16 %v2794
        %v2814 = vunpack.c.h.b16 %v2794
        %v2815 = vunpack.c.l.b16 %v2795
        %v2816 = vunpack.c.h.b16 %v2795
        %v2817 = vunpack.c.l.b16 %v2796
        %v2818 = vunpack.c.h.b16 %v2796
        %v2819 = vunpack.c.l.b16 %v2797
        %v2820 = vunpack.c.h.b16 %v2797
        %v2821 = vunpack.c.l.b16 %v2798
        %v2822 = vunpack.c.h.b16 %v2798
        %v2823 = vpack.c.b16 %v2807, %v2807
        %v2824 = vpack.c.b16 %v2808, %v2808
        %v2825 = vpack.c.b16 %v2809, %v2809
        %v2826 = vpack.c.b16 %v2810, %v2810
        %v2827 = vpack.c.b16 %v2811, %v2811
        %v2828 = vpack.c.b16 %v2812, %v2812
        %v2829 = vpack.c.b16 %v2813, %v2813
        %v2830 = vpack.c.b16 %v2814, %v2814
        %v2831 = vpack.c.b16 %v2815, %v2815
        %v2832 = vpack.c.b16 %v2816, %v2816
        %v2833 = vpack.c.b16 %v2817, %v2817
        %v2834 = vpack.c.b16 %v2818, %v2818
        %v2835 = vpack.c.b16 %v2819, %v2819
        %v2836 = vpack.c.b16 %v2820, %v2820
        %v2837 = vpack.c.b16 %v2821, %v2821
        %v2838 = vpack.c.b16 %v2822, %v2822
        %2855 = vst [vmem:[%s532] sm:$0xf] %v2823
        %2856 = vst [vmem:[%s532 + $0x4] sm:$0xf] %v2824
        %2857 = vst [vmem:[%s532 + $0x8] sm:$0xf] %v2825
        %2858 = vst [vmem:[%s532 + $0xc] sm:$0xf] %v2826
        %2859 = vst [vmem:[%s532 + $0x10] sm:$0xf] %v2827
        %2860 = vst [vmem:[%s532 + $0x14] sm:$0xf] %v2828
        %2861 = vst [vmem:[%s532 + $0x18] sm:$0xf] %v2829
        %2862 = vst [vmem:[%s532 + $0x1c] sm:$0xf] %v2830
        %2863 = vst [vmem:[%s532 + $0x20] sm:$0xf] %v2831
        %2864 = vst [vmem:[%s532 + $0x24] sm:$0xf] %v2832
        %2865 = vst [vmem:[%s532 + $0x28] sm:$0xf] %v2833
        %2866 = vst [vmem:[%s532 + $0x2c] sm:$0xf] %v2834
        %2867 = vst [vmem:[%s532 + $0x30] sm:$0xf] %v2835
        %2868 = vst [vmem:[%s532 + $0x34] sm:$0xf] %v2836
        %2869 = vst [vmem:[%s532 + $0x38] sm:$0xf] %v2837
        %2870 = vst [vmem:[%s532 + $0x3c] sm:$0xf] %v2838
        %s2871 = sand.u32 %s260, 1
        %s2872 = scalar_lea.sflag [#allocation4], %s2871
        %s2873 = sand.u32 %s260, 1
        %s2874 = smul.addr %s2873, 64
        %s2875 = scalar_lea.vmem [#allocation17], %s2874
        // Predicated region
        $region93: #{tpu_custom_call.1} parent=55 // pred_check
          %p2876 = pneg %p270
        $region94: #{tpu_custom_call.1} parent=55 // pred_check_branch
          %2878 = sbr.rel (%p2876) target = $region96
        $region95: #{tpu_custom_call.1} parent=55 // pred_region
          %s2879 = smul.u32 16, %s37
          %s2881 = ssub.s32 1024, 1024
          %2882 = vsyncadd %s2872, %s2881
          %s2883 = smul.addr %s36, 16
          %s2884 = sadd.s32 %s2879, %s2883
          %s2885 = smul.addr %s2884, 64
          %s2886 = scalar_lea.hbm %s9, %s2885
          %s2887 = sshll.u32 %s2875, 4
          %s2888 = int_to_ptr.vmem [resolvable:$true] %s2887
          %2893 = dma.vmem_to_hbm [thread:$0]  %s2888, 1024, %s2886, %s2872, 64, 64, 4
        $region96: #{tpu_custom_call.1} parent=55 // pred_fallthru
          _
      $region56: #{tpu_custom_call.1} parent=5 // pred_fallthru
        _
      %p2894 = scmp.le.s32.totalorder 2, %s27
      // Predicated region
      $region97: #{tpu_custom_call.1} parent=5 // pred_check
        %p2895 = pneg %p2894
      $region98: #{tpu_custom_call.1} parent=5 // pred_check_branch
        %2897 = sbr.rel (%p2895) target = $region100
      $region99: #{tpu_custom_call.1} parent=5 // pred_region
        %s2898 = ssub.s32 %s27, 2
        // Predicated region
        $region101: #{tpu_custom_call.1} parent=99 // pred_check
          %p2899 = pneg %p276
        $region102: #{tpu_custom_call.1} parent=99 // pred_check_branch
          %2901 = sbr.rel (%p2899) target = $region104
        $region103: #{tpu_custom_call.1} parent=99 // pred_region
          %s2902 = sand.u32 %s261, 1
          %s2903 = scalar_lea.sflag [#allocation4], %s2902
          %s2904 = sand.u32 %s261, 1
          %s2905 = smul.addr %s2904, 64
          %s2906 = scalar_lea.vmem [#allocation17], %s2905
          %2907 = dma.done %s2903, 1024
        $region104: #{tpu_custom_call.1} parent=99 // pred_fallthru
          _
      $region100: #{tpu_custom_call.1} parent=5 // pred_fallthru
        _
    $region6: #{tpu_custom_call.1} parent=1 // loop_footer
      %s31 = sadd.s32 1, %s27
    $region7: #{tpu_custom_call.1} parent=1 // loop_footer_branch
      %26 = sbr.rel target = $region3
    $region8: #{tpu_custom_call.1} parent=1 // loop_exit
      _
    %2908 = vsyncpa [#allocation3], 1
    %s2909 = scalar_lea.sflag [#allocation3], 1
    %2910 = vsyncpa %s2909, 1
    %2911 = vsyncpa [#allocation6], 1
    %s2912 = scalar_lea.sflag [#allocation6], 1
    %2913 = vsyncpa %s2912, 1
    %2914 = vsyncpa [#allocation9], 1
    %2915 = vsyncpa [#allocation12], 1
    %2916 = vsyncpa [#allocation15], 1
    %2917 = vsyncpa [#allocation4], 1
    %s2918 = scalar_lea.sflag [#allocation4], 1
    %2919 = vsyncpa %s2918, 1

</llo_original>
